<compile_context>
chip_gen: v7x
topology: tpu7x:2x2x1
jax: 0.10.0
libtpu: 0.0.40
codegen_flags: <defaults>
</compile_context>

<pallas_src>
import math

import jax
import jax.numpy as jnp
from jax.experimental import pallas as pl
from jax.experimental.pallas import tpu as pltpu

NUM_HEADS = 4
LN_EPS = 1e-5

_PACKED_ORDER = ("w_qk", "w_v", "w_o", "w_1", "w_2", "small")


def _pick_chunk(total, preferred):
    """Largest preferred tile that divides `total`, else the full extent."""
    for c in preferred:
        if c < total and total % c == 0:
            return c
    return total


def _layer_norm(x, gamma, beta):
    mu = jnp.mean(x, axis=-1, keepdims=True)
    var = jnp.mean((x - mu) ** 2, axis=-1, keepdims=True)
    return (x - mu) * jax.lax.rsqrt(var + LN_EPS) * gamma + beta


def fused_encoder_kernel(src_ref, pos_ref,
                         wqk_ref, wv_ref, wo_ref, w1_ref, w2_ref, sm_ref,
                         out_ref):
    """One grid step == one encoder layer applied to one batch split.

    Grid = (batch_splits, L). The activation lives in the VMEM-resident output
    block across the L ("arbitrary") axis: seeded from src at layer 0, written
    back to HBM only when the batch split changes / at the end.
    """
    layer = pl.program_id(1)

    @pl.when(layer == 0)
    def _seed():
        out_ref[...] = src_ref[...]

    Bb, N, D = out_ref.shape
    H = NUM_HEADS
    dh = D // H
    dff = w1_ref.shape[-1]

    # Static tile sizes (Python ints): query-row tile and d_ff chunk.
    TQ = _pick_chunk(N, (256, 128))
    CF = _pick_chunk(dff, (512, 256))

    # Packed small per-layer params: rows = [bq*scale, bk, bv, bo, b1, b2,
    #                                        g1, be1, g2, be2], lane-padded.
    sm = sm_ref[0]                                   # [10, max(D, dff)] f32
    b_q, b_k, b_v, b_o = (sm[i:i + 1, :D] for i in range(4))
    b_1 = sm[4:5, :dff]
    b_2 = sm[5:6, :D]
    g1, be1, g2, be2 = (sm[i:i + 1, :D] for i in range(6, 10))

    x3 = out_ref[...]                                # resident activation, f32
    x = x3.reshape(Bb * N, D)
    qk_in = (x3 + pos_ref[...]).reshape(Bb * N, D)   # q = k = src + pos; v = src

    # Fused, pre-transposed, pre-scaled Q|K projection and the V projection.
    # Biases added once in f32; per-head slices are cast to bf16 at use sites.
    qk = jnp.dot(qk_in.astype(jnp.bfloat16), wqk_ref[0],
                 preferred_element_type=jnp.float32)                 # [Bb*N, 2D]
    q3 = (qk[:, :D] + b_q).reshape(Bb, N, D)
    k3 = (qk[:, D:] + b_k).reshape(Bb, N, D)
    v3 = (jnp.dot(x.astype(jnp.bfloat16), wv_ref[0],
                  preferred_element_type=jnp.float32) + b_v).reshape(Bb, N, D)

    wo = wo_ref[0]                                   # [D, D]   bf16 [in, out]
    w1 = w1_ref[0]                                   # [D, dff] bf16
    w2 = w2_ref[0]                                   # [dff, D] bf16

    # Everything past the projections is row-wise except the key reduction, so
    # the whole attention->LN1->FFN->LN2 path is tiled over query rows.
    for q0 in range(0, N, TQ):
        x_rows = x3[:, q0:q0 + TQ, :].reshape(Bb * TQ, D)

        # Per-head attention; Wo applied & accumulated per head (MXU, f32 acc).
        attn = jnp.zeros((Bb * TQ, D), jnp.float32)
        for h in range(H):
            c0 = h * dh
            q_h = q3[:, q0:q0 + TQ, c0:c0 + dh].astype(jnp.bfloat16)  # [Bb,TQ,dh]
            k_h = k3[:, :, c0:c0 + dh].astype(jnp.bfloat16)           # [Bb,N,dh]
            v_h = v3[:, :, c0:c0 + dh].astype(jnp.bfloat16)           # [Bb,N,dh]
            # NOTE: on v6e, verify via pl.lower_as_mlir that this A.B^T
            # contraction does not introduce an explicit XLU transpose of k_h.
            s = jnp.einsum('bqd,bkd->bqk', q_h, k_h,
                           preferred_element_type=jnp.float32)        # [Bb,TQ,N]
            s = s - jnp.max(s, axis=-1, keepdims=True)
            e = jnp.exp(s)
            a = e / jnp.sum(e, axis=-1, keepdims=True)                # exact div
            o = jnp.einsum('bqk,bkd->bqd', a.astype(jnp.bfloat16), v_h,
                           preferred_element_type=jnp.float32)        # [Bb,TQ,dh]
            attn += jnp.dot(o.reshape(Bb * TQ, dh).astype(jnp.bfloat16),
                            wo[c0:c0 + dh, :],
                            preferred_element_type=jnp.float32)

        # Residual + LayerNorm 1 (f32).
        x1 = _layer_norm(x_rows + attn + b_o, g1, be1)

        # Feed-forward chunked over d_ff: h2 += relu(x1 @ W1[:,c] + b1[c]) @ W2[c,:]
        x1b = x1.astype(jnp.bfloat16)
        h2 = jnp.zeros((Bb * TQ, D), jnp.float32)
        for f0 in range(0, dff, CF):
            h1 = jnp.dot(x1b, w1[:, f0:f0 + CF],
                         preferred_element_type=jnp.float32) + b_1[:, f0:f0 + CF]
            h1 = jnp.maximum(h1, 0.0)
            h2 += jnp.dot(h1.astype(jnp.bfloat16), w2[f0:f0 + CF, :],
                          preferred_element_type=jnp.float32)

        # Residual + LayerNorm 2, write this query tile of the resident block.
        y = _layer_norm(x1 + h2 + b_2, g2, be2)
        out_ref[:, q0:q0 + TQ, :] = y.reshape(Bb, TQ, D)


def transformer_encoder(src, pos, packed, *, batch_splits=None,
                        vmem_limit_bytes=None):
    """Apply all L fused encoder layers in a single pallas_call."""
    B, N, D = src.shape
    L = packed["w_qk"].shape[0]
    weights = [packed[k] for k in _PACKED_ORDER]

    if batch_splits is None:
        batch_splits = 2 if B % 2 == 0 else 1   # use both TCs on v7x
    assert B % batch_splits == 0
    Bb = B // batch_splits

    act_spec = pl.BlockSpec((Bb, N, D), lambda s, l: (s, 0, 0))
    w_specs = [pl.BlockSpec((1,) + tuple(w.shape[1:]), lambda s, l: (l, 0, 0))
               for w in weights]

    if vmem_limit_bytes is None:
        # Rough post-tiling working set: resident act + src/pos blocks,
        # double-buffered per-layer weights, q/k/v f32 copies, per-tile
        # logits / FFN chunk temporaries; clamped to a range that is safe on
        # every generation (v5e default 16 MiB .. v7x physical 64 MiB).
        dff = packed["w_1"].shape[-1]
        act = Bb * N * D * 4
        wbytes = sum(int(w.nbytes) for w in weights) // L
        tq, cf = min(N, 256), min(dff, 512)
        temps = 8 * act + 2 * Bb * tq * N * 4 + 3 * Bb * tq * max(cf, D) * 4
        est = 3 * act + 2 * wbytes + temps + (4 << 20)
        vmem_limit_bytes = int(min(max(est, 32 << 20), 56 << 20))

    # TODO(synk): at real DETR sizes pad N host-side to a multiple of 128 and
    # fold a key-padding mask (-inf on padded keys) into the softmax.
    return pl.pallas_call(
        fused_encoder_kernel,
        out_shape=jax.ShapeDtypeStruct((B, N, D), src.dtype),
        grid_spec=pltpu.PrefetchScalarGridSpec(
            num_scalar_prefetch=0,
            grid=(batch_splits, L),            # (parallel batch, sequential L)
            in_specs=[act_spec, act_spec] + w_specs,
            out_specs=act_spec,
        ),
        compiler_params=pltpu.CompilerParams(
            dimension_semantics=("parallel", "arbitrary"),
            vmem_limit_bytes=vmem_limit_bytes,
        ),
        # src aliases the output; jit callers should donate src to realize the
        # HBM buffer reuse (otherwise XLA inserts a copy — still correct).
        input_output_aliases={0: 0},
    )(src, pos, *weights)


def init_layer_params(key, d_model, d_ff):
    """PyTorch-convention (out_features, in_features) parameters, f32."""
    ks = jax.random.split(key, 12)
    s = 0.02
    return {
        "wq": s * jax.random.normal(ks[0], (d_model, d_model), jnp.float32),
        "wk": s * jax.random.normal(ks[1], (d_model, d_model), jnp.float32),
        "wv": s * jax.random.normal(ks[2], (d_model, d_model), jnp.float32),
        "bq": s * jax.random.normal(ks[3], (d_model,), jnp.float32),
        "bk": s * jax.random.normal(ks[4], (d_model,), jnp.float32),
        "bv": s * jax.random.normal(ks[5], (d_model,), jnp.float32),
        "wo": s * jax.random.normal(ks[6], (d_model, d_model), jnp.float32),
        "bo": s * jax.random.normal(ks[7], (d_model,), jnp.float32),
        "w1": s * jax.random.normal(ks[8], (d_ff, d_model), jnp.float32),
        "b1": s * jax.random.normal(ks[9], (d_ff,), jnp.float32),
        "w2": s * jax.random.normal(ks[10], (d_model, d_ff), jnp.float32),
        "b2": s * jax.random.normal(ks[11], (d_model,), jnp.float32),
        "g1": jnp.ones((d_model,), jnp.float32),
        "be1": jnp.zeros((d_model,), jnp.float32),
        "g2": jnp.ones((d_model,), jnp.float32),
        "be2": jnp.zeros((d_model,), jnp.float32),
    }


def pack_params(layer_params):
    """One-time host-side packing of PyTorch-layout params for the fused kernel.

    Transpose to [in, out], fuse Wq|Wk into one [D, 2D] matrix, fold 1/sqrt(dh)
    into the Q weights/bias, cast matmul weights to bf16, pack all small
    per-layer vectors into one [L, 10, max(D, dff)] f32 array, stack over L.
    """
    d_model = layer_params[0]["wq"].shape[0]
    d_ff = layer_params[0]["w1"].shape[0]
    scale = 1.0 / math.sqrt(d_model // NUM_HEADS)
    C = max(d_model, d_ff)

    def stack(fn, dtype):
        return jnp.stack([fn(p) for p in layer_params], axis=0).astype(dtype)

    def pad_row(v):
        return jnp.pad(v, (0, C - v.shape[0]))

    def small(p):
        rows = [p["bq"] * scale, p["bk"], p["bv"], p["bo"], p["b1"], p["b2"],
                p["g1"], p["be1"], p["g2"], p["be2"]]
        return jnp.stack([pad_row(r) for r in rows], axis=0)         # [10, C]

    return {
        "w_qk": stack(lambda p: jnp.concatenate(
            [p["wq"].T * scale, p["wk"].T], axis=1), jnp.bfloat16),  # [D, 2D]
        "w_v": stack(lambda p: p["wv"].T, jnp.bfloat16),             # [D, D]
        "w_o": stack(lambda p: p["wo"].T, jnp.bfloat16),             # [D, D]
        "w_1": stack(lambda p: p["w1"].T, jnp.bfloat16),             # [D, dff]
        "w_2": stack(lambda p: p["w2"].T, jnp.bfloat16),             # [dff, D]
        "small": stack(small, jnp.float32),                          # [10, C]
    }


def _ref_layer_norm(x, g, b):
    mu = jnp.mean(x, axis=-1, keepdims=True)
    var = jnp.mean((x - mu) ** 2, axis=-1, keepdims=True)
    return (x - mu) / jnp.sqrt(var + LN_EPS) * g + b


def encoder_reference(src, pos, layer_params):
    """Pure-JAX f32 reference of the stacked TransformerEncoderLayer forward."""
    B, N, D = src.shape
    H = NUM_HEADS
    dh = D // H
    x = src
    for p in layer_params:
        qk_in = x + pos
        q = qk_in @ p["wq"].T + p["bq"]
        k = qk_in @ p["wk"].T + p["bk"]
        v = x @ p["wv"].T + p["bv"]

        def heads(t):
            return t.reshape(B, N, H, dh).transpose(0, 2, 1, 3)
        qh, kh, vh = heads(q), heads(k), heads(v)
        s = jnp.einsum('bhqd,bhkd->bhqk', qh, kh) / math.sqrt(dh)
        a = jax.nn.softmax(s, axis=-1)
        o = jnp.einsum('bhqk,bhkd->bhqd', a, vh)
        o = o.transpose(0, 2, 1, 3).reshape(B, N, D)
        attn = o @ p["wo"].T + p["bo"]
        x1 = _ref_layer_norm(x + attn, p["g1"], p["be1"])
        ff = jax.nn.relu(x1 @ p["w1"].T + p["b1"]) @ p["w2"].T + p["b2"]
        x = _ref_layer_norm(x1 + ff, p["g2"], p["be2"])
    return x


if __name__ == "__main__":
    B, N, D = 2, 8, 32          # batch, sequence, d_model
    D_FF = 64
    NUM_LAYERS = 2              # TransformerEncoder depth; small for the test

    key = jax.random.PRNGKey(0)
    k_src, k_pos, k_w = jax.random.split(key, 3)
    src = jax.random.normal(k_src, (B, N, D), jnp.float32)
    pos = jax.random.normal(k_pos, (B, N, D), jnp.float32)

    layer_keys = jax.random.split(k_w, NUM_LAYERS)
    torch_layout_params = [init_layer_params(k, D, D_FF) for k in layer_keys]
    packed = pack_params(torch_layout_params)

    # Reference first (src may be donated to the kernel via the output alias).
    ref = encoder_reference(src, pos, torch_layout_params)
    ref = jax.block_until_ready(ref)

    out = transformer_encoder(src, pos, packed)
    out = jax.block_until_ready(out)

    assert out.shape == (B, N, D)
    assert jnp.all(jnp.isfinite(out))
    err = float(jnp.max(jnp.abs(out - ref)))
    assert jnp.allclose(out, ref, atol=3e-2, rtol=3e-2), err
    print("KERNEL_OK")
</pallas_src>

<mosaic_0001>
module attributes {stable_mosaic.version = 11 : i64} {
  func.func @fused_encoder_kernel(%arg0: i32, %arg1: i32, %arg2: memref<1x8x32xf32, #tpu.memory_space<vmem>>, %arg3: memref<1x8x32xf32, #tpu.memory_space<vmem>>, %arg4: memref<1x32x64xbf16, #tpu.memory_space<vmem>>, %arg5: memref<1x32x32xbf16, #tpu.memory_space<vmem>>, %arg6: memref<1x32x32xbf16, #tpu.memory_space<vmem>>, %arg7: memref<1x32x64xbf16, #tpu.memory_space<vmem>>, %arg8: memref<1x64x32xbf16, #tpu.memory_space<vmem>>, %arg9: memref<1x10x64xf32, #tpu.memory_space<vmem>>, %arg10: memref<1x8x32xf32, #tpu.memory_space<vmem>>) attributes {dimension_semantics = [#tpu.dimension_semantics<parallel>, #tpu.dimension_semantics<arbitrary>], iteration_bounds = array<i64: 2, 2>, scalar_prefetch = 0 : i64, scratch_operands = 0 : i64, tpu.core_type = #tpu.core_type<tc>, window_params = [{transform_indices = @transform_0, window_bounds = array<i64: 1, 8, 32>}, {transform_indices = @transform_1, window_bounds = array<i64: 1, 8, 32>}, {transform_indices = @transform_2, window_bounds = array<i64: 1, 32, 64>}, {transform_indices = @transform_3, window_bounds = array<i64: 1, 32, 32>}, {transform_indices = @transform_4, window_bounds = array<i64: 1, 32, 32>}, {transform_indices = @transform_5, window_bounds = array<i64: 1, 32, 64>}, {transform_indices = @transform_6, window_bounds = array<i64: 1, 64, 32>}, {transform_indices = @transform_7, window_bounds = array<i64: 1, 10, 64>}, {transform_indices = @transform_8, window_bounds = array<i64: 1, 8, 32>}]} {
    %c0_i32 = arith.constant 0 : i32
    %0 = arith.cmpi eq, %arg1, %c0_i32 : i32
    %1 = arith.extui %0 : i1 to i32
    %c0_i32_0 = arith.constant 0 : i32
    %2 = arith.cmpi ne, %1, %c0_i32_0 : i32
    scf.if %2 {
      %c0_63 = arith.constant 0 : index
      %c0_64 = arith.constant 0 : index
      %c0_65 = arith.constant 0 : index
      %201 = vector.load %arg2[%c0_63, %c0_64, %c0_65] : memref<1x8x32xf32, #tpu.memory_space<vmem>>, vector<1x8x32xf32>
      %c0_66 = arith.constant 0 : index
      %c0_67 = arith.constant 0 : index
      %c0_68 = arith.constant 0 : index
      %202 = vector.load %arg10[%c0_66, %c0_67, %c0_68] : memref<1x8x32xf32, #tpu.memory_space<vmem>>, vector<1x8x32xf32>
      tpu.vector_store %arg10[%c0_66, %c0_67, %c0_68], %201 {strides = array<i32>} : memref<1x8x32xf32, #tpu.memory_space<vmem>>, vector<1x8x32xf32>,
    } else {
    }
    %c0 = arith.constant 0 : index
    %c0_1 = arith.constant 0 : index
    %c0_2 = arith.constant 0 : index
    %3 = vector.load %arg9[%c0, %c0_1, %c0_2] : memref<1x10x64xf32, #tpu.memory_space<vmem>>, vector<1x10x64xf32>
    %4 = vector.shape_cast %3 : vector<1x10x64xf32> to vector<10x64xf32>
    %5 = vector.extract_strided_slice %4 {offsets = [0, 0], sizes = [1, 32], strides = [1, 1]} : vector<10x64xf32> to vector<1x32xf32>
    %6 = vector.extract_strided_slice %4 {offsets = [1, 0], sizes = [1, 32], strides = [1, 1]} : vector<10x64xf32> to vector<1x32xf32>
    %7 = vector.extract_strided_slice %4 {offsets = [2, 0], sizes = [1, 32], strides = [1, 1]} : vector<10x64xf32> to vector<1x32xf32>
    %8 = vector.extract_strided_slice %4 {offsets = [3, 0], sizes = [1, 32], strides = [1, 1]} : vector<10x64xf32> to vector<1x32xf32>
    %9 = vector.extract_strided_slice %4 {offsets = [4, 0], sizes = [1, 64], strides = [1, 1]} : vector<10x64xf32> to vector<1x64xf32>
    %10 = vector.extract_strided_slice %4 {offsets = [5, 0], sizes = [1, 32], strides = [1, 1]} : vector<10x64xf32> to vector<1x32xf32>
    %11 = vector.extract_strided_slice %4 {offsets = [6, 0], sizes = [1, 32], strides = [1, 1]} : vector<10x64xf32> to vector<1x32xf32>
    %12 = vector.extract_strided_slice %4 {offsets = [7, 0], sizes = [1, 32], strides = [1, 1]} : vector<10x64xf32> to vector<1x32xf32>
    %13 = vector.extract_strided_slice %4 {offsets = [8, 0], sizes = [1, 32], strides = [1, 1]} : vector<10x64xf32> to vector<1x32xf32>
    %14 = vector.extract_strided_slice %4 {offsets = [9, 0], sizes = [1, 32], strides = [1, 1]} : vector<10x64xf32> to vector<1x32xf32>
    %c0_3 = arith.constant 0 : index
    %c0_4 = arith.constant 0 : index
    %c0_5 = arith.constant 0 : index
    %15 = vector.load %arg10[%c0_3, %c0_4, %c0_5] : memref<1x8x32xf32, #tpu.memory_space<vmem>>, vector<1x8x32xf32>
    %16 = vector.shape_cast %15 : vector<1x8x32xf32> to vector<8x32xf32>
    %c0_6 = arith.constant 0 : index
    %c0_7 = arith.constant 0 : index
    %c0_8 = arith.constant 0 : index
    %17 = vector.load %arg3[%c0_6, %c0_7, %c0_8] : memref<1x8x32xf32, #tpu.memory_space<vmem>>, vector<1x8x32xf32>
    %18 = arith.addf %15, %17 : vector<1x8x32xf32>
    %19 = vector.shape_cast %18 : vector<1x8x32xf32> to vector<8x32xf32>
    %20 = arith.truncf %19 : vector<8x32xf32> to vector<8x32xbf16>
    %c0_9 = arith.constant 0 : index
    %c0_10 = arith.constant 0 : index
    %c0_11 = arith.constant 0 : index
    %21 = vector.load %arg4[%c0_9, %c0_10, %c0_11] : memref<1x32x64xbf16, #tpu.memory_space<vmem>>, vector<1x32x64xbf16>
    %22 = vector.shape_cast %21 : vector<1x32x64xbf16> to vector<32x64xbf16>
    %cst = arith.constant dense<0.000000e+00> : vector<8x64xf32>
    %23 = tpu.matmul %20, %22, %cst {dimension_numbers = #tpu.dot_dimension_numbers<[1], [0], [0], [1], [0, 0, 1, 1], [], []>} : vector<8x32xbf16>, vector<32x64xbf16>, vector<8x64xf32> -> vector<8x64xf32>
    %24 = vector.extract_strided_slice %23 {offsets = [0, 0], sizes = [8, 32], strides = [1, 1]} : vector<8x64xf32> to vector<8x32xf32>
    %25 = vector.broadcast %5 : vector<1x32xf32> to vector<8x32xf32>
    %26 = arith.addf %24, %25 : vector<8x32xf32>
    %27 = vector.shape_cast %26 : vector<8x32xf32> to vector<1x8x32xf32>
    %28 = vector.extract_strided_slice %23 {offsets = [0, 32], sizes = [8, 32], strides = [1, 1]} : vector<8x64xf32> to vector<8x32xf32>
    %29 = vector.broadcast %6 : vector<1x32xf32> to vector<8x32xf32>
    %30 = arith.addf %28, %29 : vector<8x32xf32>
    %31 = vector.shape_cast %30 : vector<8x32xf32> to vector<1x8x32xf32>
    %32 = arith.truncf %16 : vector<8x32xf32> to vector<8x32xbf16>
    %c0_12 = arith.constant 0 : index
    %c0_13 = arith.constant 0 : index
    %c0_14 = arith.constant 0 : index
    %33 = vector.load %arg5[%c0_12, %c0_13, %c0_14] : memref<1x32x32xbf16, #tpu.memory_space<vmem>>, vector<1x32x32xbf16>
    %34 = vector.shape_cast %33 : vector<1x32x32xbf16> to vector<32x32xbf16>
    %cst_15 = arith.constant dense<0.000000e+00> : vector<8x32xf32>
    %35 = tpu.matmul %32, %34, %cst_15 {dimension_numbers = #tpu.dot_dimension_numbers<[1], [0], [0], [1], [0, 0, 1, 1], [], []>} : vector<8x32xbf16>, vector<32x32xbf16>, vector<8x32xf32> -> vector<8x32xf32>
    %36 = vector.broadcast %7 : vector<1x32xf32> to vector<8x32xf32>
    %37 = arith.addf %35, %36 : vector<8x32xf32>
    %38 = vector.shape_cast %37 : vector<8x32xf32> to vector<1x8x32xf32>
    %c0_16 = arith.constant 0 : index
    %c0_17 = arith.constant 0 : index
    %c0_18 = arith.constant 0 : index
    %39 = vector.load %arg6[%c0_16, %c0_17, %c0_18] : memref<1x32x32xbf16, #tpu.memory_space<vmem>>, vector<1x32x32xbf16>
    %40 = vector.shape_cast %39 : vector<1x32x32xbf16> to vector<32x32xbf16>
    %c0_19 = arith.constant 0 : index
    %c0_20 = arith.constant 0 : index
    %c0_21 = arith.constant 0 : index
    %41 = vector.load %arg7[%c0_19, %c0_20, %c0_21] : memref<1x32x64xbf16, #tpu.memory_space<vmem>>, vector<1x32x64xbf16>
    %42 = vector.shape_cast %41 : vector<1x32x64xbf16> to vector<32x64xbf16>
    %c0_22 = arith.constant 0 : index
    %c0_23 = arith.constant 0 : index
    %c0_24 = arith.constant 0 : index
    %43 = vector.load %arg8[%c0_22, %c0_23, %c0_24] : memref<1x64x32xbf16, #tpu.memory_space<vmem>>, vector<1x64x32xbf16>
    %44 = vector.shape_cast %43 : vector<1x64x32xbf16> to vector<64x32xbf16>
    %45 = vector.shape_cast %15 : vector<1x8x32xf32> to vector<8x32xf32>
    %cst_25 = arith.constant 0.000000e+00 : f32
    %46 = vector.broadcast %cst_25 : f32 to vector<8x32xf32>
    %47 = vector.extract_strided_slice %27 {offsets = [0, 0, 0], sizes = [1, 8, 8], strides = [1, 1, 1]} : vector<1x8x32xf32> to vector<1x8x8xf32>
    %48 = arith.truncf %47 : vector<1x8x8xf32> to vector<1x8x8xbf16>
    %49 = vector.extract_strided_slice %31 {offsets = [0, 0, 0], sizes = [1, 8, 8], strides = [1, 1, 1]} : vector<1x8x32xf32> to vector<1x8x8xf32>
    %50 = arith.truncf %49 : vector<1x8x8xf32> to vector<1x8x8xbf16>
    %51 = vector.extract_strided_slice %38 {offsets = [0, 0, 0], sizes = [1, 8, 8], strides = [1, 1, 1]} : vector<1x8x32xf32> to vector<1x8x8xf32>
    %52 = arith.truncf %51 : vector<1x8x8xf32> to vector<1x8x8xbf16>
    "tpu.trace_start"() <{level = 10 : i32, message = "bqd,bkd->bqk"}> : () -> ()
    %cst_26 = arith.constant dense<0.000000e+00> : vector<1x8x8xf32>
    %53 = tpu.matmul %48, %50, %cst_26 {dimension_numbers = #tpu.dot_dimension_numbers<[2], [2], [1], [1], [0, 0, 0, 1, 1, 1], [0], [0]>} : vector<1x8x8xbf16>, vector<1x8x8xbf16>, vector<1x8x8xf32> -> vector<1x8x8xf32>
    "tpu.trace_stop"() : () -> ()
    %cst_27 = arith.constant dense<0xFF800000> : vector<1x8xf32>
    %54 = vector.multi_reduction <maximumf>, %53, %cst_27 [2] : vector<1x8x8xf32> to vector<1x8xf32>
    %55 = vector.shape_cast %54 : vector<1x8xf32> to vector<1x8x1xf32>
    %56 = vector.broadcast %55 : vector<1x8x1xf32> to vector<1x8x8xf32>
    %57 = arith.subf %53, %56 : vector<1x8x8xf32>
    %58 = math.exp %57 : vector<1x8x8xf32>
    %cst_28 = arith.constant dense<0.000000e+00> : vector<1x8xf32>
    %59 = vector.multi_reduction <add>, %58, %cst_28 [2] : vector<1x8x8xf32> to vector<1x8xf32>
    %60 = vector.shape_cast %59 : vector<1x8xf32> to vector<1x8x1xf32>
    %61 = vector.broadcast %60 : vector<1x8x1xf32> to vector<1x8x8xf32>
    %62 = arith.divf %58, %61 : vector<1x8x8xf32>
    %63 = arith.truncf %62 : vector<1x8x8xf32> to vector<1x8x8xbf16>
    "tpu.trace_start"() <{level = 10 : i32, message = "bqk,bkd->bqd"}> : () -> ()
    %cst_29 = arith.constant dense<0.000000e+00> : vector<1x8x8xf32>
    %64 = tpu.matmul %63, %52, %cst_29 {dimension_numbers = #tpu.dot_dimension_numbers<[2], [1], [1], [2], [0, 0, 0, 1, 1, 2], [0], [0]>} : vector<1x8x8xbf16>, vector<1x8x8xbf16>, vector<1x8x8xf32> -> vector<1x8x8xf32>
    "tpu.trace_stop"() : () -> ()
    %65 = vector.shape_cast %64 : vector<1x8x8xf32> to vector<8x8xf32>
    %66 = arith.truncf %65 : vector<8x8xf32> to vector<8x8xbf16>
    %67 = vector.extract_strided_slice %40 {offsets = [0, 0], sizes = [8, 32], strides = [1, 1]} : vector<32x32xbf16> to vector<8x32xbf16>
    %cst_30 = arith.constant dense<0.000000e+00> : vector<8x32xf32>
    %68 = tpu.matmul %66, %67, %cst_30 {dimension_numbers = #tpu.dot_dimension_numbers<[1], [0], [0], [1], [0, 0, 1, 1], [], []>} : vector<8x8xbf16>, vector<8x32xbf16>, vector<8x32xf32> -> vector<8x32xf32>
    %69 = arith.addf %46, %68 : vector<8x32xf32>
    %70 = vector.extract_strided_slice %27 {offsets = [0, 0, 8], sizes = [1, 8, 8], strides = [1, 1, 1]} : vector<1x8x32xf32> to vector<1x8x8xf32>
    %71 = arith.truncf %70 : vector<1x8x8xf32> to vector<1x8x8xbf16>
    %72 = vector.extract_strided_slice %31 {offsets = [0, 0, 8], sizes = [1, 8, 8], strides = [1, 1, 1]} : vector<1x8x32xf32> to vector<1x8x8xf32>
    %73 = arith.truncf %72 : vector<1x8x8xf32> to vector<1x8x8xbf16>
    %74 = vector.extract_strided_slice %38 {offsets = [0, 0, 8], sizes = [1, 8, 8], strides = [1, 1, 1]} : vector<1x8x32xf32> to vector<1x8x8xf32>
    %75 = arith.truncf %74 : vector<1x8x8xf32> to vector<1x8x8xbf16>
    "tpu.trace_start"() <{level = 10 : i32, message = "bqd,bkd->bqk"}> : () -> ()
    %cst_31 = arith.constant dense<0.000000e+00> : vector<1x8x8xf32>
    %76 = tpu.matmul %71, %73, %cst_31 {dimension_numbers = #tpu.dot_dimension_numbers<[2], [2], [1], [1], [0, 0, 0, 1, 1, 1], [0], [0]>} : vector<1x8x8xbf16>, vector<1x8x8xbf16>, vector<1x8x8xf32> -> vector<1x8x8xf32>
    "tpu.trace_stop"() : () -> ()
    %cst_32 = arith.constant dense<0xFF800000> : vector<1x8xf32>
    %77 = vector.multi_reduction <maximumf>, %76, %cst_32 [2] : vector<1x8x8xf32> to vector<1x8xf32>
    %78 = vector.shape_cast %77 : vector<1x8xf32> to vector<1x8x1xf32>
    %79 = vector.broadcast %78 : vector<1x8x1xf32> to vector<1x8x8xf32>
    %80 = arith.subf %76, %79 : vector<1x8x8xf32>
    %81 = math.exp %80 : vector<1x8x8xf32>
    %cst_33 = arith.constant dense<0.000000e+00> : vector<1x8xf32>
    %82 = vector.multi_reduction <add>, %81, %cst_33 [2] : vector<1x8x8xf32> to vector<1x8xf32>
    %83 = vector.shape_cast %82 : vector<1x8xf32> to vector<1x8x1xf32>
    %84 = vector.broadcast %83 : vector<1x8x1xf32> to vector<1x8x8xf32>
    %85 = arith.divf %81, %84 : vector<1x8x8xf32>
    %86 = arith.truncf %85 : vector<1x8x8xf32> to vector<1x8x8xbf16>
    "tpu.trace_start"() <{level = 10 : i32, message = "bqk,bkd->bqd"}> : () -> ()
    %cst_34 = arith.constant dense<0.000000e+00> : vector<1x8x8xf32>
    %87 = tpu.matmul %86, %75, %cst_34 {dimension_numbers = #tpu.dot_dimension_numbers<[2], [1], [1], [2], [0, 0, 0, 1, 1, 2], [0], [0]>} : vector<1x8x8xbf16>, vector<1x8x8xbf16>, vector<1x8x8xf32> -> vector<1x8x8xf32>
    "tpu.trace_stop"() : () -> ()
    %88 = vector.shape_cast %87 : vector<1x8x8xf32> to vector<8x8xf32>
    %89 = arith.truncf %88 : vector<8x8xf32> to vector<8x8xbf16>
    %90 = vector.extract_strided_slice %40 {offsets = [8, 0], sizes = [8, 32], strides = [1, 1]} : vector<32x32xbf16> to vector<8x32xbf16>
    %cst_35 = arith.constant dense<0.000000e+00> : vector<8x32xf32>
    %91 = tpu.matmul %89, %90, %cst_35 {dimension_numbers = #tpu.dot_dimension_numbers<[1], [0], [0], [1], [0, 0, 1, 1], [], []>} : vector<8x8xbf16>, vector<8x32xbf16>, vector<8x32xf32> -> vector<8x32xf32>
    %92 = arith.addf %69, %91 : vector<8x32xf32>
    %93 = vector.extract_strided_slice %27 {offsets = [0, 0, 16], sizes = [1, 8, 8], strides = [1, 1, 1]} : vector<1x8x32xf32> to vector<1x8x8xf32>
    %94 = arith.truncf %93 : vector<1x8x8xf32> to vector<1x8x8xbf16>
    %95 = vector.extract_strided_slice %31 {offsets = [0, 0, 16], sizes = [1, 8, 8], strides = [1, 1, 1]} : vector<1x8x32xf32> to vector<1x8x8xf32>
    %96 = arith.truncf %95 : vector<1x8x8xf32> to vector<1x8x8xbf16>
    %97 = vector.extract_strided_slice %38 {offsets = [0, 0, 16], sizes = [1, 8, 8], strides = [1, 1, 1]} : vector<1x8x32xf32> to vector<1x8x8xf32>
    %98 = arith.truncf %97 : vector<1x8x8xf32> to vector<1x8x8xbf16>
    "tpu.trace_start"() <{level = 10 : i32, message = "bqd,bkd->bqk"}> : () -> ()
    %cst_36 = arith.constant dense<0.000000e+00> : vector<1x8x8xf32>
    %99 = tpu.matmul %94, %96, %cst_36 {dimension_numbers = #tpu.dot_dimension_numbers<[2], [2], [1], [1], [0, 0, 0, 1, 1, 1], [0], [0]>} : vector<1x8x8xbf16>, vector<1x8x8xbf16>, vector<1x8x8xf32> -> vector<1x8x8xf32>
    "tpu.trace_stop"() : () -> ()
    %cst_37 = arith.constant dense<0xFF800000> : vector<1x8xf32>
    %100 = vector.multi_reduction <maximumf>, %99, %cst_37 [2] : vector<1x8x8xf32> to vector<1x8xf32>
    %101 = vector.shape_cast %100 : vector<1x8xf32> to vector<1x8x1xf32>
    %102 = vector.broadcast %101 : vector<1x8x1xf32> to vector<1x8x8xf32>
    %103 = arith.subf %99, %102 : vector<1x8x8xf32>
    %104 = math.exp %103 : vector<1x8x8xf32>
    %cst_38 = arith.constant dense<0.000000e+00> : vector<1x8xf32>
    %105 = vector.multi_reduction <add>, %104, %cst_38 [2] : vector<1x8x8xf32> to vector<1x8xf32>
    %106 = vector.shape_cast %105 : vector<1x8xf32> to vector<1x8x1xf32>
    %107 = vector.broadcast %106 : vector<1x8x1xf32> to vector<1x8x8xf32>
    %108 = arith.divf %104, %107 : vector<1x8x8xf32>
    %109 = arith.truncf %108 : vector<1x8x8xf32> to vector<1x8x8xbf16>
    "tpu.trace_start"() <{level = 10 : i32, message = "bqk,bkd->bqd"}> : () -> ()
    %cst_39 = arith.constant dense<0.000000e+00> : vector<1x8x8xf32>
    %110 = tpu.matmul %109, %98, %cst_39 {dimension_numbers = #tpu.dot_dimension_numbers<[2], [1], [1], [2], [0, 0, 0, 1, 1, 2], [0], [0]>} : vector<1x8x8xbf16>, vector<1x8x8xbf16>, vector<1x8x8xf32> -> vector<1x8x8xf32>
    "tpu.trace_stop"() : () -> ()
    %111 = vector.shape_cast %110 : vector<1x8x8xf32> to vector<8x8xf32>
    %112 = arith.truncf %111 : vector<8x8xf32> to vector<8x8xbf16>
    %113 = vector.extract_strided_slice %40 {offsets = [16, 0], sizes = [8, 32], strides = [1, 1]} : vector<32x32xbf16> to vector<8x32xbf16>
    %cst_40 = arith.constant dense<0.000000e+00> : vector<8x32xf32>
    %114 = tpu.matmul %112, %113, %cst_40 {dimension_numbers = #tpu.dot_dimension_numbers<[1], [0], [0], [1], [0, 0, 1, 1], [], []>} : vector<8x8xbf16>, vector<8x32xbf16>, vector<8x32xf32> -> vector<8x32xf32>
    %115 = arith.addf %92, %114 : vector<8x32xf32>
    %116 = vector.extract_strided_slice %27 {offsets = [0, 0, 24], sizes = [1, 8, 8], strides = [1, 1, 1]} : vector<1x8x32xf32> to vector<1x8x8xf32>
    %117 = arith.truncf %116 : vector<1x8x8xf32> to vector<1x8x8xbf16>
    %118 = vector.extract_strided_slice %31 {offsets = [0, 0, 24], sizes = [1, 8, 8], strides = [1, 1, 1]} : vector<1x8x32xf32> to vector<1x8x8xf32>
    %119 = arith.truncf %118 : vector<1x8x8xf32> to vector<1x8x8xbf16>
    %120 = vector.extract_strided_slice %38 {offsets = [0, 0, 24], sizes = [1, 8, 8], strides = [1, 1, 1]} : vector<1x8x32xf32> to vector<1x8x8xf32>
    %121 = arith.truncf %120 : vector<1x8x8xf32> to vector<1x8x8xbf16>
    "tpu.trace_start"() <{level = 10 : i32, message = "bqd,bkd->bqk"}> : () -> ()
    %cst_41 = arith.constant dense<0.000000e+00> : vector<1x8x8xf32>
    %122 = tpu.matmul %117, %119, %cst_41 {dimension_numbers = #tpu.dot_dimension_numbers<[2], [2], [1], [1], [0, 0, 0, 1, 1, 1], [0], [0]>} : vector<1x8x8xbf16>, vector<1x8x8xbf16>, vector<1x8x8xf32> -> vector<1x8x8xf32>
    "tpu.trace_stop"() : () -> ()
    %cst_42 = arith.constant dense<0xFF800000> : vector<1x8xf32>
    %123 = vector.multi_reduction <maximumf>, %122, %cst_42 [2] : vector<1x8x8xf32> to vector<1x8xf32>
    %124 = vector.shape_cast %123 : vector<1x8xf32> to vector<1x8x1xf32>
    %125 = vector.broadcast %124 : vector<1x8x1xf32> to vector<1x8x8xf32>
    %126 = arith.subf %122, %125 : vector<1x8x8xf32>
    %127 = math.exp %126 : vector<1x8x8xf32>
    %cst_43 = arith.constant dense<0.000000e+00> : vector<1x8xf32>
    %128 = vector.multi_reduction <add>, %127, %cst_43 [2] : vector<1x8x8xf32> to vector<1x8xf32>
    %129 = vector.shape_cast %128 : vector<1x8xf32> to vector<1x8x1xf32>
    %130 = vector.broadcast %129 : vector<1x8x1xf32> to vector<1x8x8xf32>
    %131 = arith.divf %127, %130 : vector<1x8x8xf32>
    %132 = arith.truncf %131 : vector<1x8x8xf32> to vector<1x8x8xbf16>
    "tpu.trace_start"() <{level = 10 : i32, message = "bqk,bkd->bqd"}> : () -> ()
    %cst_44 = arith.constant dense<0.000000e+00> : vector<1x8x8xf32>
    %133 = tpu.matmul %132, %121, %cst_44 {dimension_numbers = #tpu.dot_dimension_numbers<[2], [1], [1], [2], [0, 0, 0, 1, 1, 2], [0], [0]>} : vector<1x8x8xbf16>, vector<1x8x8xbf16>, vector<1x8x8xf32> -> vector<1x8x8xf32>
    "tpu.trace_stop"() : () -> ()
    %134 = vector.shape_cast %133 : vector<1x8x8xf32> to vector<8x8xf32>
    %135 = arith.truncf %134 : vector<8x8xf32> to vector<8x8xbf16>
    %136 = vector.extract_strided_slice %40 {offsets = [24, 0], sizes = [8, 32], strides = [1, 1]} : vector<32x32xbf16> to vector<8x32xbf16>
    %cst_45 = arith.constant dense<0.000000e+00> : vector<8x32xf32>
    %137 = tpu.matmul %135, %136, %cst_45 {dimension_numbers = #tpu.dot_dimension_numbers<[1], [0], [0], [1], [0, 0, 1, 1], [], []>} : vector<8x8xbf16>, vector<8x32xbf16>, vector<8x32xf32> -> vector<8x32xf32>
    %138 = arith.addf %115, %137 : vector<8x32xf32>
    %139 = arith.addf %45, %138 : vector<8x32xf32>
    %140 = vector.broadcast %8 : vector<1x32xf32> to vector<8x32xf32>
    %141 = arith.addf %139, %140 : vector<8x32xf32>
    %cst_46 = arith.constant dense<0.000000e+00> : vector<8xf32>
    %142 = vector.multi_reduction <add>, %141, %cst_46 [1] : vector<8x32xf32> to vector<8xf32>
    %143 = vector.shape_cast %142 : vector<8xf32> to vector<8x1xf32>
    %cst_47 = arith.constant 3.200000e+01 : f32
    %144 = vector.broadcast %cst_47 : f32 to vector<8x1xf32>
    %145 = arith.divf %143, %144 : vector<8x1xf32>
    %146 = vector.broadcast %145 : vector<8x1xf32> to vector<8x32xf32>
    %147 = arith.subf %141, %146 : vector<8x32xf32>
    %148 = arith.mulf %147, %147 : vector<8x32xf32>
    %cst_48 = arith.constant dense<0.000000e+00> : vector<8xf32>
    %149 = vector.multi_reduction <add>, %148, %cst_48 [1] : vector<8x32xf32> to vector<8xf32>
    %150 = vector.shape_cast %149 : vector<8xf32> to vector<8x1xf32>
    %cst_49 = arith.constant 3.200000e+01 : f32
    %151 = vector.broadcast %cst_49 : f32 to vector<8x1xf32>
    %152 = arith.divf %150, %151 : vector<8x1xf32>
    %153 = vector.broadcast %145 : vector<8x1xf32> to vector<8x32xf32>
    %154 = arith.subf %141, %153 : vector<8x32xf32>
    %cst_50 = arith.constant 9.99999974E-6 : f32
    %155 = vector.broadcast %cst_50 : f32 to vector<8x1xf32>
    %156 = arith.addf %152, %155 : vector<8x1xf32>
    %157 = math.rsqrt %156 : vector<8x1xf32>
    %158 = vector.broadcast %157 : vector<8x1xf32> to vector<8x32xf32>
    %159 = arith.mulf %154, %158 : vector<8x32xf32>
    %160 = vector.broadcast %11 : vector<1x32xf32> to vector<8x32xf32>
    %161 = arith.mulf %159, %160 : vector<8x32xf32>
    %162 = vector.broadcast %12 : vector<1x32xf32> to vector<8x32xf32>
    %163 = arith.addf %161, %162 : vector<8x32xf32>
    %164 = arith.truncf %163 : vector<8x32xf32> to vector<8x32xbf16>
    %cst_51 = arith.constant 0.000000e+00 : f32
    %165 = vector.broadcast %cst_51 : f32 to vector<8x32xf32>
    %cst_52 = arith.constant dense<0.000000e+00> : vector<8x64xf32>
    %166 = tpu.matmul %164, %42, %cst_52 {dimension_numbers = #tpu.dot_dimension_numbers<[1], [0], [0], [1], [0, 0, 1, 1], [], []>} : vector<8x32xbf16>, vector<32x64xbf16>, vector<8x64xf32> -> vector<8x64xf32>
    %167 = vector.broadcast %9 : vector<1x64xf32> to vector<8x64xf32>
    %168 = arith.addf %166, %167 : vector<8x64xf32>
    %cst_53 = arith.constant 0.000000e+00 : f32
    %169 = vector.broadcast %cst_53 : f32 to vector<8x64xf32>
    %170 = arith.maximumf %168, %169 : vector<8x64xf32>
    %171 = arith.truncf %170 : vector<8x64xf32> to vector<8x64xbf16>
    %cst_54 = arith.constant dense<0.000000e+00> : vector<8x32xf32>
    %172 = tpu.matmul %171, %44, %cst_54 {dimension_numbers = #tpu.dot_dimension_numbers<[1], [0], [0], [1], [0, 0, 1, 1], [], []>} : vector<8x64xbf16>, vector<64x32xbf16>, vector<8x32xf32> -> vector<8x32xf32>
    %173 = arith.addf %165, %172 : vector<8x32xf32>
    %174 = arith.addf %163, %173 : vector<8x32xf32>
    %175 = vector.broadcast %10 : vector<1x32xf32> to vector<8x32xf32>
    %176 = arith.addf %174, %175 : vector<8x32xf32>
    %cst_55 = arith.constant dense<0.000000e+00> : vector<8xf32>
    %177 = vector.multi_reduction <add>, %176, %cst_55 [1] : vector<8x32xf32> to vector<8xf32>
    %178 = vector.shape_cast %177 : vector<8xf32> to vector<8x1xf32>
    %cst_56 = arith.constant 3.200000e+01 : f32
    %179 = vector.broadcast %cst_56 : f32 to vector<8x1xf32>
    %180 = arith.divf %178, %179 : vector<8x1xf32>
    %181 = vector.broadcast %180 : vector<8x1xf32> to vector<8x32xf32>
    %182 = arith.subf %176, %181 : vector<8x32xf32>
    %183 = arith.mulf %182, %182 : vector<8x32xf32>
    %cst_57 = arith.constant dense<0.000000e+00> : vector<8xf32>
    %184 = vector.multi_reduction <add>, %183, %cst_57 [1] : vector<8x32xf32> to vector<8xf32>
    %185 = vector.shape_cast %184 : vector<8xf32> to vector<8x1xf32>
    %cst_58 = arith.constant 3.200000e+01 : f32
    %186 = vector.broadcast %cst_58 : f32 to vector<8x1xf32>
    %187 = arith.divf %185, %186 : vector<8x1xf32>
    %188 = vector.broadcast %180 : vector<8x1xf32> to vector<8x32xf32>
    %189 = arith.subf %176, %188 : vector<8x32xf32>
    %cst_59 = arith.constant 9.99999974E-6 : f32
    %190 = vector.broadcast %cst_59 : f32 to vector<8x1xf32>
    %191 = arith.addf %187, %190 : vector<8x1xf32>
    %192 = math.rsqrt %191 : vector<8x1xf32>
    %193 = vector.broadcast %192 : vector<8x1xf32> to vector<8x32xf32>
    %194 = arith.mulf %189, %193 : vector<8x32xf32>
    %195 = vector.broadcast %13 : vector<1x32xf32> to vector<8x32xf32>
    %196 = arith.mulf %194, %195 : vector<8x32xf32>
    %197 = vector.broadcast %14 : vector<1x32xf32> to vector<8x32xf32>
    %198 = arith.addf %196, %197 : vector<8x32xf32>
    %199 = vector.shape_cast %198 : vector<8x32xf32> to vector<1x8x32xf32>
    %c0_60 = arith.constant 0 : index
    %c0_61 = arith.constant 0 : index
    %c0_62 = arith.constant 0 : index
    %200 = vector.load %arg10[%c0_60, %c0_61, %c0_62] : memref<1x8x32xf32, #tpu.memory_space<vmem>>, vector<1x8x32xf32>
    tpu.vector_store %arg10[%c0_60, %c0_61, %c0_62], %199 {strides = array<i32>} : memref<1x8x32xf32, #tpu.memory_space<vmem>>, vector<1x8x32xf32>,
    return
  }
  func.func @transform_0(%arg0: i32, %arg1: i32) -> (i32, i32, i32) {
    %c0_i32 = arith.constant 0 : i32
    %c0_i32_0 = arith.constant 0 : i32
    %c0_i32_1 = arith.constant 0 : i32
    return %arg0, %c0_i32, %c0_i32_0 : i32, i32, i32
  }
  func.func @transform_1(%arg0: i32, %arg1: i32) -> (i32, i32, i32) {
    %c0_i32 = arith.constant 0 : i32
    %c0_i32_0 = arith.constant 0 : i32
    %c0_i32_1 = arith.constant 0 : i32
    return %arg0, %c0_i32, %c0_i32_0 : i32, i32, i32
  }
  func.func @transform_2(%arg0: i32, %arg1: i32) -> (i32, i32, i32) {
    %c0_i32 = arith.constant 0 : i32
    %c0_i32_0 = arith.constant 0 : i32
    %c0_i32_1 = arith.constant 0 : i32
    return %arg1, %c0_i32, %c0_i32_0 : i32, i32, i32
  }
  func.func @transform_3(%arg0: i32, %arg1: i32) -> (i32, i32, i32) {
    %c0_i32 = arith.constant 0 : i32
    %c0_i32_0 = arith.constant 0 : i32
    %c0_i32_1 = arith.constant 0 : i32
    return %arg1, %c0_i32, %c0_i32_0 : i32, i32, i32
  }
  func.func @transform_4(%arg0: i32, %arg1: i32) -> (i32, i32, i32) {
    %c0_i32 = arith.constant 0 : i32
    %c0_i32_0 = arith.constant 0 : i32
    %c0_i32_1 = arith.constant 0 : i32
    return %arg1, %c0_i32, %c0_i32_0 : i32, i32, i32
  }
  func.func @transform_5(%arg0: i32, %arg1: i32) -> (i32, i32, i32) {
    %c0_i32 = arith.constant 0 : i32
    %c0_i32_0 = arith.constant 0 : i32
    %c0_i32_1 = arith.constant 0 : i32
    return %arg1, %c0_i32, %c0_i32_0 : i32, i32, i32
  }
  func.func @transform_6(%arg0: i32, %arg1: i32) -> (i32, i32, i32) {
    %c0_i32 = arith.constant 0 : i32
    %c0_i32_0 = arith.constant 0 : i32
    %c0_i32_1 = arith.constant 0 : i32
    return %arg1, %c0_i32, %c0_i32_0 : i32, i32, i32
  }
  func.func @transform_7(%arg0: i32, %arg1: i32) -> (i32, i32, i32) {
    %c0_i32 = arith.constant 0 : i32
    %c0_i32_0 = arith.constant 0 : i32
    %c0_i32_1 = arith.constant 0 : i32
    return %arg1, %c0_i32, %c0_i32_0 : i32, i32, i32
  }
  func.func @transform_8(%arg0: i32, %arg1: i32) -> (i32, i32, i32) {
    %c0_i32 = arith.constant 0 : i32
    %c0_i32_0 = arith.constant 0 : i32
    %c0_i32_1 = arith.constant 0 : i32
    return %arg0, %c0_i32, %c0_i32_0 : i32, i32, i32
  }
}

</mosaic_0001>

<llo_original>
// kernel: tpu_custom_call.1
$region0: #{tpu_custom_call.1}
  #allocation0 [shape = 'u32[]', space=smem, size = 0x4, offset = 0x4, fixed_abs, tag = 'smem constant byte address 0x4 - core index']
  #allocation1 [shape = 'u32[144,128]{1,0:T(1,128)}', space=vmem, size = 0x12000, scoped, tag = 'internal scratch']
  %s0 = inlined_call_operand.hbm [shape: f32[2,8,32], index: 0, kind: input, shape index: {}, may-alias: {0,8}]
  %s1 = inlined_call_operand.hbm [shape: f32[2,8,32], index: 1, kind: input, shape index: {}]
  %s2 = inlined_call_operand.vmem [shape: bf16[2,32,64], index: 2, kind: input, shape index: {}]
  %s3 = inlined_call_operand.vmem [shape: bf16[2,32,32], index: 3, kind: input, shape index: {}]
  %s4 = inlined_call_operand.vmem [shape: bf16[2,32,32], index: 4, kind: input, shape index: {}]
  %s5 = inlined_call_operand.vmem [shape: bf16[2,32,64], index: 5, kind: input, shape index: {}]
  %s6 = inlined_call_operand.vmem [shape: bf16[2,64,32], index: 6, kind: input, shape index: {}]
  %s7 = inlined_call_operand.vmem [shape: f32[2,10,64], index: 7, kind: input, shape index: {}]
  %s8 = inlined_call_operand.hbm [shape: f32[2,8,32], index: 8, kind: output, shape index: {}, may-alias: {0,8}]
  %s9 = sld [smem:[#allocation0]]
  $region77: #{tpu_custom_call.1} parent=0
    _
  %s11 = ssub.s32 1, %s9
  %s12 = scalar_select 0, %s11, %s9
  $region1: #{tpu_custom_call.1} parent=0
    #allocation2 [shape = 'u8[8192]{0}', space=vmem, size = 0x2000, scoped, tag = 'input window, operand 0']
    #allocation3 [shape = 's32[2]{0}', space=sflag, size = 0x8, scoped, tag = 'scoped memory for tpu_custom_call.1']
    #allocation4 [shape = 's32[2]{0}', space=sflag, size = 0x8, scoped, tag = 'scoped memory for tpu_custom_call.1']
    #allocation5 [shape = 'u8[8192]{0}', space=vmem, size = 0x2000, scoped, tag = 'input window, operand 1']
    #allocation6 [shape = 's32[2]{0}', space=sflag, size = 0x8, scoped, tag = 'scoped memory for tpu_custom_call.1']
    #allocation7 [shape = 'u8[8192]{0}', space=vmem, size = 0x2000, scoped, tag = 'output window, operand 0']
    %13 = vsyncpa [#allocation3], 0
    %s14 = scalar_lea.sflag [#allocation3], 1
    %15 = vsyncpa %s14, 0
    %16 = vsyncpa [#allocation6], 0
    %s17 = scalar_lea.sflag [#allocation6], 1
    %18 = vsyncpa %s17, 0
    %19 = vsyncpa [#allocation4], 0
    %s20 = scalar_lea.sflag [#allocation4], 1
    %21 = vsyncpa %s20, 0
    loop: start=0, step=1, limit=6
    $region2: #{tpu_custom_call.1} parent=1 // loop_pre_header
      _
    $region3: #{tpu_custom_call.1} parent=1 // loop_header
      %s23 = sphi 0, %s27
      %p24 = scmp.ge.s32.totalorder %s23, 6
      %s30 = sphi 0, %s42
      %s31 = sphi 0, %s38
      %s32 = sphi 0, %s30
      %s33 = sphi 0, %s31
      %s34 = sphi 0, %s32
      %s35 = sphi 0, %s33
      %s45 = sphi 0, %s47
      %s48 = sphi 0, %s45
      %s49 = sphi 0, %s48
      %s65 = sphi 0, %s49
      %s71 = sphi 0, %s73
      %s74 = sphi 0, %s71
      %s75 = sphi 0, %s74
      %s91 = sphi 0, %s75
      %s97 = sphi 0, %s99
      %s100 = sphi 0, %s97
      %s101 = sphi 0, %s100
      %s117 = sphi 0, %s101
      %s123 = sphi 0, %s125
      %s126 = sphi 0, %s123
      %s127 = sphi 0, %s126
      %s143 = sphi 0, %s127
      %s149 = sphi 0, %s151
      %s152 = sphi 0, %s149
      %s153 = sphi 0, %s152
      %s169 = sphi 0, %s153
      %s175 = sphi 0, %s177
      %s178 = sphi 0, %s175
      %s179 = sphi 0, %s178
      %s195 = sphi 0, %s179
      %s201 = sphi 0, %s203
      %s204 = sphi 0, %s201
      %s205 = sphi 0, %s204
      %s221 = sphi 0, %s205
      %s227 = sphi 0, %s229
      %s230 = sphi 0, %s227
      %s231 = sphi 0, %s230
      %s247 = sphi 0, %s231
      %s253 = sphi 0, %s255
      %s256 = sphi 0, %s253
      %s257 = sphi 0, %s256
      %s273 = sphi 0, %s257
    $region4: #{tpu_custom_call.1} parent=1 // loop_header_branch
      %26 = sbr.rel (%p24) target = $region8
    $region5: #{tpu_custom_call.1} parent=1 // loop_body
      %s28 = ssub.s32 %s23, 1
      %s29 = ssub.s32 %s23, 2
      %s36 = sadd.s32 1, %s31
      %p37 = scmp.ge.s32.totalorder %s36, 2
      %s38 = scalar_select %p37, 0, %s36
      %s39 = sadd.s32 1, %s30
      %s40 = scalar_select %p37, %s39, %s30
      %p41 = scmp.ge.s32.totalorder %s40, 2
      %s42 = scalar_select %p41, 0, %s40
      %s43 = ssub.s32 %s30, %s42
      %p44 = scmp.eq.s32.totalorder %s43, 0
      %s46 = sadd.s32 %s45, 1
      %s47 = scalar_select %p44, %s45, %s46
      %p50 = pneg %p44
      %p51 = scmp.eq.s32.totalorder %s23, 3
      %p52 = por %p50, %p51
      %p53 = scmp.ne.s32.totalorder %s45, %s48
      %p54 = scmp.eq.s32.totalorder %s23, 0
      %p55 = por %p53, %p54
      %p56 = scmp.ne.s32.totalorder %s45, %s48
      %p57 = scmp.eq.s32.totalorder %s28, 3
      %p58 = por %p56, %p57
      %p59 = scmp.ne.s32.totalorder %s48, %s49
      %p60 = scmp.eq.s32.totalorder %s28, 0
      %p61 = por %p59, %p60
      %p62 = scmp.ne.s32.totalorder %s48, %s49
      %p63 = scmp.eq.s32.totalorder %s29, 3
      %p64 = por %p62, %p63
      %p66 = scmp.ne.s32.totalorder %s49, %s65
      %p67 = scmp.eq.s32.totalorder %s29, 0
      %p68 = por %p66, %p67
      %s69 = ssub.s32 %s30, %s42
      %p70 = scmp.eq.s32.totalorder %s69, 0
      %s72 = sadd.s32 %s71, 1
      %s73 = scalar_select %p70, %s71, %s72
      %p76 = pneg %p70
      %p77 = scmp.eq.s32.totalorder %s23, 3
      %p78 = por %p76, %p77
      %p79 = scmp.ne.s32.totalorder %s71, %s74
      %p80 = scmp.eq.s32.totalorder %s23, 0
      %p81 = por %p79, %p80
      %p82 = scmp.ne.s32.totalorder %s71, %s74
      %p83 = scmp.eq.s32.totalorder %s28, 3
      %p84 = por %p82, %p83
      %p85 = scmp.ne.s32.totalorder %s74, %s75
      %p86 = scmp.eq.s32.totalorder %s28, 0
      %p87 = por %p85, %p86
      %p88 = scmp.ne.s32.totalorder %s74, %s75
      %p89 = scmp.eq.s32.totalorder %s29, 3
      %p90 = por %p88, %p89
      %p92 = scmp.ne.s32.totalorder %s75, %s91
      %p93 = scmp.eq.s32.totalorder %s29, 0
      %p94 = por %p92, %p93
      %s95 = ssub.s32 %s31, %s38
      %p96 = scmp.eq.s32.totalorder %s95, 0
      %s98 = sadd.s32 %s97, 1
      %s99 = scalar_select %p96, %s97, %s98
      %p102 = pneg %p96
      %p103 = scmp.eq.s32.totalorder %s23, 3
      %p104 = por %p102, %p103
      %p105 = scmp.ne.s32.totalorder %s97, %s100
      %p106 = scmp.eq.s32.totalorder %s23, 0
      %p107 = por %p105, %p106
      %p108 = scmp.ne.s32.totalorder %s97, %s100
      %p109 = scmp.eq.s32.totalorder %s28, 3
      %p110 = por %p108, %p109
      %p111 = scmp.ne.s32.totalorder %s100, %s101
      %p112 = scmp.eq.s32.totalorder %s28, 0
      %p113 = por %p111, %p112
      %p114 = scmp.ne.s32.totalorder %s100, %s101
      %p115 = scmp.eq.s32.totalorder %s29, 3
      %p116 = por %p114, %p115
      %p118 = scmp.ne.s32.totalorder %s101, %s117
      %p119 = scmp.eq.s32.totalorder %s29, 0
      %p120 = por %p118, %p119
      %s121 = ssub.s32 %s31, %s38
      %p122 = scmp.eq.s32.totalorder %s121, 0
      %s124 = sadd.s32 %s123, 1
      %s125 = scalar_select %p122, %s123, %s124
      %p128 = pneg %p122
      %p129 = scmp.eq.s32.totalorder %s23, 3
      %p130 = por %p128, %p129
      %p131 = scmp.ne.s32.totalorder %s123, %s126
      %p132 = scmp.eq.s32.totalorder %s23, 0
      %p133 = por %p131, %p132
      %p134 = scmp.ne.s32.totalorder %s123, %s126
      %p135 = scmp.eq.s32.totalorder %s28, 3
      %p136 = por %p134, %p135
      %p137 = scmp.ne.s32.totalorder %s126, %s127
      %p138 = scmp.eq.s32.totalorder %s28, 0
      %p139 = por %p137, %p138
      %p140 = scmp.ne.s32.totalorder %s126, %s127
      %p141 = scmp.eq.s32.totalorder %s29, 3
      %p142 = por %p140, %p141
      %p144 = scmp.ne.s32.totalorder %s127, %s143
      %p145 = scmp.eq.s32.totalorder %s29, 0
      %p146 = por %p144, %p145
      %s147 = ssub.s32 %s31, %s38
      %p148 = scmp.eq.s32.totalorder %s147, 0
      %s150 = sadd.s32 %s149, 1
      %s151 = scalar_select %p148, %s149, %s150
      %p154 = pneg %p148
      %p155 = scmp.eq.s32.totalorder %s23, 3
      %p156 = por %p154, %p155
      %p157 = scmp.ne.s32.totalorder %s149, %s152
      %p158 = scmp.eq.s32.totalorder %s23, 0
      %p159 = por %p157, %p158
      %p160 = scmp.ne.s32.totalorder %s149, %s152
      %p161 = scmp.eq.s32.totalorder %s28, 3
      %p162 = por %p160, %p161
      %p163 = scmp.ne.s32.totalorder %s152, %s153
      %p164 = scmp.eq.s32.totalorder %s28, 0
      %p165 = por %p163, %p164
      %p166 = scmp.ne.s32.totalorder %s152, %s153
      %p167 = scmp.eq.s32.totalorder %s29, 3
      %p168 = por %p166, %p167
      %p170 = scmp.ne.s32.totalorder %s153, %s169
      %p171 = scmp.eq.s32.totalorder %s29, 0
      %p172 = por %p170, %p171
      %s173 = ssub.s32 %s31, %s38
      %p174 = scmp.eq.s32.totalorder %s173, 0
      %s176 = sadd.s32 %s175, 1
      %s177 = scalar_select %p174, %s175, %s176
      %p180 = pneg %p174
      %p181 = scmp.eq.s32.totalorder %s23, 3
      %p182 = por %p180, %p181
      %p183 = scmp.ne.s32.totalorder %s175, %s178
      %p184 = scmp.eq.s32.totalorder %s23, 0
      %p185 = por %p183, %p184
      %p186 = scmp.ne.s32.totalorder %s175, %s178
      %p187 = scmp.eq.s32.totalorder %s28, 3
      %p188 = por %p186, %p187
      %p189 = scmp.ne.s32.totalorder %s178, %s179
      %p190 = scmp.eq.s32.totalorder %s28, 0
      %p191 = por %p189, %p190
      %p192 = scmp.ne.s32.totalorder %s178, %s179
      %p193 = scmp.eq.s32.totalorder %s29, 3
      %p194 = por %p192, %p193
      %p196 = scmp.ne.s32.totalorder %s179, %s195
      %p197 = scmp.eq.s32.totalorder %s29, 0
      %p198 = por %p196, %p197
      %s199 = ssub.s32 %s31, %s38
      %p200 = scmp.eq.s32.totalorder %s199, 0
      %s202 = sadd.s32 %s201, 1
      %s203 = scalar_select %p200, %s201, %s202
      %p206 = pneg %p200
      %p207 = scmp.eq.s32.totalorder %s23, 3
      %p208 = por %p206, %p207
      %p209 = scmp.ne.s32.totalorder %s201, %s204
      %p210 = scmp.eq.s32.totalorder %s23, 0
      %p211 = por %p209, %p210
      %p212 = scmp.ne.s32.totalorder %s201, %s204
      %p213 = scmp.eq.s32.totalorder %s28, 3
      %p214 = por %p212, %p213
      %p215 = scmp.ne.s32.totalorder %s204, %s205
      %p216 = scmp.eq.s32.totalorder %s28, 0
      %p217 = por %p215, %p216
      %p218 = scmp.ne.s32.totalorder %s204, %s205
      %p219 = scmp.eq.s32.totalorder %s29, 3
      %p220 = por %p218, %p219
      %p222 = scmp.ne.s32.totalorder %s205, %s221
      %p223 = scmp.eq.s32.totalorder %s29, 0
      %p224 = por %p222, %p223
      %s225 = ssub.s32 %s31, %s38
      %p226 = scmp.eq.s32.totalorder %s225, 0
      %s228 = sadd.s32 %s227, 1
      %s229 = scalar_select %p226, %s227, %s228
      %p232 = pneg %p226
      %p233 = scmp.eq.s32.totalorder %s23, 3
      %p234 = por %p232, %p233
      %p235 = scmp.ne.s32.totalorder %s227, %s230
      %p236 = scmp.eq.s32.totalorder %s23, 0
      %p237 = por %p235, %p236
      %p238 = scmp.ne.s32.totalorder %s227, %s230
      %p239 = scmp.eq.s32.totalorder %s28, 3
      %p240 = por %p238, %p239
      %p241 = scmp.ne.s32.totalorder %s230, %s231
      %p242 = scmp.eq.s32.totalorder %s28, 0
      %p243 = por %p241, %p242
      %p244 = scmp.ne.s32.totalorder %s230, %s231
      %p245 = scmp.eq.s32.totalorder %s29, 3
      %p246 = por %p244, %p245
      %p248 = scmp.ne.s32.totalorder %s231, %s247
      %p249 = scmp.eq.s32.totalorder %s29, 0
      %p250 = por %p248, %p249
      %s251 = ssub.s32 %s30, %s42
      %p252 = scmp.eq.s32.totalorder %s251, 0
      %s254 = sadd.s32 %s253, 1
      %s255 = scalar_select %p252, %s253, %s254
      %p258 = pneg %p252
      %p259 = scmp.eq.s32.totalorder %s23, 3
      %p260 = por %p258, %p259
      %p261 = scmp.ne.s32.totalorder %s253, %s256
      %p262 = scmp.eq.s32.totalorder %s23, 0
      %p263 = por %p261, %p262
      %p264 = scmp.ne.s32.totalorder %s253, %s256
      %p265 = scmp.eq.s32.totalorder %s28, 3
      %p266 = por %p264, %p265
      %p267 = scmp.ne.s32.totalorder %s256, %s257
      %p268 = scmp.eq.s32.totalorder %s28, 0
      %p269 = por %p267, %p268
      %p270 = scmp.ne.s32.totalorder %s256, %s257
      %p271 = scmp.eq.s32.totalorder %s29, 3
      %p272 = por %p270, %p271
      %p274 = scmp.ne.s32.totalorder %s257, %s273
      %p275 = scmp.eq.s32.totalorder %s29, 0
      %p276 = por %p274, %p275
      %p277 = scmp.le.s32.totalorder 1, %s23
      %p278 = scmp.lt.s32.totalorder %s23, 5
      %p279 = pnand %p277, %p278
      %p280 = pneg %p279
      // Predicated region
      $region9: #{tpu_custom_call.1} parent=5 // pred_check
        _
      $region10: #{tpu_custom_call.1} parent=5 // pred_check_branch
        %282 = sbr.rel (%p279) target = $region12
      $region11: #{tpu_custom_call.1} parent=5 // pred_region
        %s283 = ssub.s32 %s23, 1
      $region12: #{tpu_custom_call.1} parent=5 // pred_fallthru
        _
      %p284 = scmp.lt.s32.totalorder %s23, 4
      // Predicated region
      $region13: #{tpu_custom_call.1} parent=5 // pred_check
        %p285 = pneg %p284
      $region14: #{tpu_custom_call.1} parent=5 // pred_check_branch
        %287 = sbr.rel (%p285) target = $region16
      $region15: #{tpu_custom_call.1} parent=5 // pred_region
        // Predicated region
        $region17: #{tpu_custom_call.1} parent=15 // pred_check
          %p288 = pneg %p55
        $region18: #{tpu_custom_call.1} parent=15 // pred_check_branch
          %290 = sbr.rel (%p288) target = $region20
        $region19: #{tpu_custom_call.1} parent=15 // pred_region
          %s291 = sand.u32 %s45, 1
          %s292 = scalar_lea.sflag [#allocation3], %s291
          %s293 = sand.u32 %s45, 1
          %s294 = smul.addr %s293, 8
          %s295 = scalar_lea.vmem [#allocation2], %s294
          %s297 = ssub.s32 128, 128
          %298 = vsyncadd %s292, %s297
          %s299 = smul.addr %s30, 128
          %s300 = scalar_lea.hbm %s0, %s299
          %s302 = sshll.u32 %s295, 4
          %s303 = int_to_ptr.vmem [resolvable:$true] %s302
          %305 = dma.hbm_to_vmem [thread:$0]  %s300, 128, %s303, %s292
        $region20: #{tpu_custom_call.1} parent=15 // pred_fallthru
          _
        // Predicated region
        $region21: #{tpu_custom_call.1} parent=15 // pred_check
          %p306 = pneg %p81
        $region22: #{tpu_custom_call.1} parent=15 // pred_check_branch
          %308 = sbr.rel (%p306) target = $region24
        $region23: #{tpu_custom_call.1} parent=15 // pred_region
          %s309 = sand.u32 %s71, 1
          %s310 = scalar_lea.sflag [#allocation6], %s309
          %s311 = sand.u32 %s71, 1
          %s312 = smul.addr %s311, 8
          %s313 = scalar_lea.vmem [#allocation5], %s312
          %s315 = ssub.s32 128, 128
          %316 = vsyncadd %s310, %s315
          %s317 = smul.addr %s30, 128
          %s318 = scalar_lea.hbm %s1, %s317
          %s320 = sshll.u32 %s313, 4
          %s321 = int_to_ptr.vmem [resolvable:$true] %s320
          %323 = dma.hbm_to_vmem [thread:$0]  %s318, 128, %s321, %s310
        $region24: #{tpu_custom_call.1} parent=15 // pred_fallthru
          _
        // Predicated region
        $region25: #{tpu_custom_call.1} parent=15 // pred_check
          %p324 = pneg %p107
        $region26: #{tpu_custom_call.1} parent=15 // pred_check_branch
          %326 = sbr.rel (%p324) target = $region28
        $region27: #{tpu_custom_call.1} parent=15 // pred_region
          %p327 = scmp.lt.s32.totalorder %s31, 1
          %s328 = scalar_select %p327, %s31, 1
          %s329 = smul.addr %s328, 4
          %s330 = smul.addr %s329, 4
          %s331 = scalar_lea.vmem %s2, %s330
        $region28: #{tpu_custom_call.1} parent=15 // pred_fallthru
          _
        // Predicated region
        $region29: #{tpu_custom_call.1} parent=15 // pred_check
          %p332 = pneg %p133
        $region30: #{tpu_custom_call.1} parent=15 // pred_check_branch
          %334 = sbr.rel (%p332) target = $region32
        $region31: #{tpu_custom_call.1} parent=15 // pred_region
          %p335 = scmp.lt.s32.totalorder %s31, 1
          %s336 = scalar_select %p335, %s31, 1
          %s337 = smul.addr %s336, 4
          %s338 = smul.addr %s337, 4
          %s339 = scalar_lea.vmem %s3, %s338
        $region32: #{tpu_custom_call.1} parent=15 // pred_fallthru
          _
        // Predicated region
        $region33: #{tpu_custom_call.1} parent=15 // pred_check
          %p340 = pneg %p159
        $region34: #{tpu_custom_call.1} parent=15 // pred_check_branch
          %342 = sbr.rel (%p340) target = $region36
        $region35: #{tpu_custom_call.1} parent=15 // pred_region
          %p343 = scmp.lt.s32.totalorder %s31, 1
          %s344 = scalar_select %p343, %s31, 1
          %s345 = smul.addr %s344, 4
          %s346 = smul.addr %s345, 4
          %s347 = scalar_lea.vmem %s4, %s346
        $region36: #{tpu_custom_call.1} parent=15 // pred_fallthru
          _
        // Predicated region
        $region37: #{tpu_custom_call.1} parent=15 // pred_check
          %p348 = pneg %p185
        $region38: #{tpu_custom_call.1} parent=15 // pred_check_branch
          %350 = sbr.rel (%p348) target = $region40
        $region39: #{tpu_custom_call.1} parent=15 // pred_region
          %p351 = scmp.lt.s32.totalorder %s31, 1
          %s352 = scalar_select %p351, %s31, 1
          %s353 = smul.addr %s352, 4
          %s354 = smul.addr %s353, 4
          %s355 = scalar_lea.vmem %s5, %s354
        $region40: #{tpu_custom_call.1} parent=15 // pred_fallthru
          _
        // Predicated region
        $region41: #{tpu_custom_call.1} parent=15 // pred_check
          %p356 = pneg %p211
        $region42: #{tpu_custom_call.1} parent=15 // pred_check_branch
          %358 = sbr.rel (%p356) target = $region44
        $region43: #{tpu_custom_call.1} parent=15 // pred_region
          %p359 = scmp.lt.s32.totalorder %s31, 1
          %s360 = scalar_select %p359, %s31, 1
          %s361 = smul.addr %s360, 8
          %s362 = smul.addr %s361, 4
          %s363 = scalar_lea.vmem %s6, %s362
        $region44: #{tpu_custom_call.1} parent=15 // pred_fallthru
          _
        // Predicated region
        $region45: #{tpu_custom_call.1} parent=15 // pred_check
          %p364 = pneg %p237
        $region46: #{tpu_custom_call.1} parent=15 // pred_check_branch
          %366 = sbr.rel (%p364) target = $region48
        $region47: #{tpu_custom_call.1} parent=15 // pred_region
          %p367 = scmp.lt.s32.totalorder %s31, 1
          %s368 = scalar_select %p367, %s31, 1
          %s369 = smul.addr %s368, 2
          %s370 = smul.addr %s369, 8
          %s371 = scalar_lea.vmem %s7, %s370
        $region48: #{tpu_custom_call.1} parent=15 // pred_fallthru
          _
      $region16: #{tpu_custom_call.1} parent=5 // pred_fallthru
        _
      %p372 = scmp.le.s32.totalorder 1, %s23
      %p373 = scmp.lt.s32.totalorder %s23, 5
      %p374 = pnand %p372, %p373
      %p375 = pneg %p374
      // Predicated region
      $region49: #{tpu_custom_call.1} parent=5 // pred_check
        _
      $region50: #{tpu_custom_call.1} parent=5 // pred_check_branch
        %377 = sbr.rel (%p374) target = $region52
      $region51: #{tpu_custom_call.1} parent=5 // pred_region
        %s378 = ssub.s32 %s23, 1
        %s379 = sand.u32 %s48, 1
        %s380 = scalar_lea.sflag [#allocation3], %s379
        %s381 = sand.u32 %s48, 1
        %s382 = smul.addr %s381, 8
        %s383 = scalar_lea.vmem [#allocation2], %s382
        // Predicated region
        $region53: #{tpu_custom_call.1} parent=51 // pred_check
          %p384 = pneg %p61
        $region54: #{tpu_custom_call.1} parent=51 // pred_check_branch
          %386 = sbr.rel (%p384) target = $region56
        $region55: #{tpu_custom_call.1} parent=51 // pred_region
          %387 = dma.done %s380, 128
        $region56: #{tpu_custom_call.1} parent=51 // pred_fallthru
          _
        %s388 = sand.u32 %s74, 1
        %s389 = scalar_lea.sflag [#allocation6], %s388
        %s390 = sand.u32 %s74, 1
        %s391 = smul.addr %s390, 8
        %s392 = scalar_lea.vmem [#allocation5], %s391
        // Predicated region
        $region57: #{tpu_custom_call.1} parent=51 // pred_check
          %p393 = pneg %p87
        $region58: #{tpu_custom_call.1} parent=51 // pred_check_branch
          %395 = sbr.rel (%p393) target = $region60
        $region59: #{tpu_custom_call.1} parent=51 // pred_region
          %396 = dma.done %s389, 128
        $region60: #{tpu_custom_call.1} parent=51 // pred_fallthru
          _
        %s397 = sand.u32 %s48, 1
        %s398 = scalar_lea.sflag [#allocation3], %s397
        %s399 = sand.u32 %s48, 1
        %s400 = smul.addr %s399, 8
        %s401 = scalar_lea.vmem [#allocation2], %s400
        %p402 = pneg %p61
        %p403 = pneg %p58
        %s404 = sand.u32 %s74, 1
        %s405 = scalar_lea.sflag [#allocation6], %s404
        %s406 = sand.u32 %s74, 1
        %s407 = smul.addr %s406, 8
        %s408 = scalar_lea.vmem [#allocation5], %s407
        %p409 = pneg %p87
        %p410 = pneg %p84
        %p411 = scmp.lt.s32.totalorder %s33, 1
        %s412 = scalar_select %p411, %s33, 1
        %s413 = smul.addr %s412, 4
        %s414 = smul.addr %s413, 4
        %s415 = scalar_lea.vmem %s2, %s414
        %p416 = pneg %p113
        %p417 = pneg %p110
        %p418 = scmp.lt.s32.totalorder %s33, 1
        %s419 = scalar_select %p418, %s33, 1
        %s420 = smul.addr %s419, 4
        %s421 = smul.addr %s420, 4
        %s422 = scalar_lea.vmem %s3, %s421
        %p423 = pneg %p139
        %p424 = pneg %p136
        %p425 = scmp.lt.s32.totalorder %s33, 1
        %s426 = scalar_select %p425, %s33, 1
        %s427 = smul.addr %s426, 4
        %s428 = smul.addr %s427, 4
        %s429 = scalar_lea.vmem %s4, %s428
        %p430 = pneg %p165
        %p431 = pneg %p162
        %p432 = scmp.lt.s32.totalorder %s33, 1
        %s433 = scalar_select %p432, %s33, 1
        %s434 = smul.addr %s433, 4
        %s435 = smul.addr %s434, 4
        %s436 = scalar_lea.vmem %s5, %s435
        %p437 = pneg %p191
        %p438 = pneg %p188
        %p439 = scmp.lt.s32.totalorder %s33, 1
        %s440 = scalar_select %p439, %s33, 1
        %s441 = smul.addr %s440, 8
        %s442 = smul.addr %s441, 4
        %s443 = scalar_lea.vmem %s6, %s442
        %p444 = pneg %p217
        %p445 = pneg %p214
        %p446 = scmp.lt.s32.totalorder %s33, 1
        %s447 = scalar_select %p446, %s33, 1
        %s448 = smul.addr %s447, 2
        %s449 = smul.addr %s448, 8
        %s450 = scalar_lea.vmem %s7, %s449
        %p451 = pneg %p243
        %p452 = pneg %p240
        %p453 = pneg %p269
        %p454 = pneg %p266
        %s455 = sand.u32 %s256, 1
        %s456 = scalar_lea.sflag [#allocation4], %s455
        %s457 = sand.u32 %s256, 1
        %s458 = smul.addr %s457, 8
        %s459 = scalar_lea.vmem [#allocation7], %s458
        %p460 = scmp.lt.s32.totalorder %s33, 1
        %s461 = scalar_select %p460, %s33, 1
        %s462 = smul.addr %s461, 4
        %s463 = smul.addr %s462, 4
        %s464 = scalar_lea.vmem %s2, %s463
        %p465 = scmp.lt.s32.totalorder %s33, 1
        %s466 = scalar_select %p465, %s33, 1
        %s467 = smul.addr %s466, 4
        %s468 = smul.addr %s467, 4
        %s469 = scalar_lea.vmem %s3, %s468
        %p470 = scmp.lt.s32.totalorder %s33, 1
        %s471 = scalar_select %p470, %s33, 1
        %s472 = smul.addr %s471, 4
        %s473 = smul.addr %s472, 4
        %s474 = scalar_lea.vmem %s4, %s473
        %p475 = scmp.lt.s32.totalorder %s33, 1
        %s476 = scalar_select %p475, %s33, 1
        %s477 = smul.addr %s476, 4
        %s478 = smul.addr %s477, 4
        %s479 = scalar_lea.vmem %s5, %s478
        %p480 = scmp.lt.s32.totalorder %s33, 1
        %s481 = scalar_select %p480, %s33, 1
        %s482 = smul.addr %s481, 8
        %s483 = smul.addr %s482, 4
        %s484 = scalar_lea.vmem %s6, %s483
        %p485 = scmp.lt.s32.totalorder %s33, 1
        %s486 = scalar_select %p485, %s33, 1
        %s487 = smul.addr %s486, 2
        %s488 = smul.addr %s487, 8
        %s489 = scalar_lea.vmem %s7, %s488
        %p491 = scmp.eq.s32.totalorder %s33, 0
        // Predicated region
        $region61: #{tpu_custom_call.1} parent=51 // pred_check
          %p492 = pneg %p491
        $region62: #{tpu_custom_call.1} parent=51 // pred_check_branch
          %494 = sbr.rel (%p492) target = $region64
        $region63: #{tpu_custom_call.1} parent=51 // pred_region
          %v495 = vld [vmem:[%s383] sm:$0xff]
          %vm496 = vcmask 261120
          %497 = vst.msk [vmem:[%s459] sm:$0xff] %vm496, %v495
        $region64: #{tpu_custom_call.1} parent=51 // pred_fallthru
          _
        %v498 = vld [vmem:[%s489] sm:$0xff]
        %v499 = vld [vmem:[%s489 + $0x8] sm:$0x3]
        %v500 = vld [vmem:[%s459] sm:$0xff]
        %v501 = vld [vmem:[%s392] sm:$0xff]
        %v502 = vadd.f32 %v500, %v501
        %v503 = vpack.c.bf16 %v502, %v502
        %v504 = vld [vmem:[%s464] sm:$0xf]
        %v505 = vld [vmem:[%s464 + $0x4] sm:$0xf]
        %v506 = vld [vmem:[%s464 + $0x8] sm:$0xf]
        %v507 = vld [vmem:[%s464 + $0xc] sm:$0xf]
        %v512 = vunpack.c.l.b16 %v504
        %v513 = vunpack.c.l.b16 %v505
        %v514 = vunpack.c.l.b16 %v506
        %v515 = vunpack.c.l.b16 %v507
        %v516 = vpack.c.b16 %v513, %v512
        %v517 = vpack.c.b16 %v515, %v514
        %vm520 = vcmask 261120
        %v522 = vsel %vm520, %v503, 0
        %524 = vmatprep.subr.bf16.mxu0 0
        %525 = vmatpush1.bf16.msra.mxu0 %v516
        %526 = vmatprep.subr.bf16.mxu0 0
        %527 = vmatpush1.bf16.msra.mxu0 %v517
        %528 = vmatprep.subr.bf16.mxu0 0
        %529 = vmatpush1.bf16.msra.mxu0 0
        %530 = vmatprep.subr.bf16.mxu0 0
        %531 = vmatpush1.bf16.msra.mxu0 0
        %532 = vmatprep.subr.bf16.mxu0 0
        %533 = vmatpush1.bf16.msra.mxu0 0
        %534 = vmatprep.subr.bf16.mxu0 0
        %535 = vmatpush1.bf16.msra.mxu0 0
        %536 = vmatprep.subr.bf16.mxu0 0
        %537 = vmatpush1.bf16.msra.mxu0 0
        %538 = vmatprep.subr.bf16.mxu0 0
        %539 = vmatpush1.bf16.msra.mxu0 0
        %540 = vmatprep.subr.bf16.mxu0 0
        %541 = vmatpush1.bf16.msra.mxu0 0
        %542 = vmatprep.subr.bf16.mxu0 0
        %543 = vmatpush1.bf16.msra.mxu0 0
        %544 = vmatprep.subr.bf16.mxu0 0
        %545 = vmatpush1.bf16.msra.mxu0 0
        %546 = vmatprep.subr.bf16.mxu0 0
        %547 = vmatpush1.bf16.msra.mxu0 0
        %548 = vmatprep.subr.bf16.mxu0 0
        %549 = vmatpush1.bf16.msra.mxu0 0
        %550 = vmatprep.subr.bf16.mxu0 0
        %551 = vmatpush1.bf16.msra.mxu0 0
        %552 = vmatprep.subr.bf16.mxu0 0
        %553 = vmatpush1.bf16.msra.mxu0 0
        %554 = vmatprep.subr.bf16.mxu0 0
        %555 = vmatpush1.bf16.msra.mxu0 0
        %556 = vmatprep.mubr.bf16.mxu0 0
        %557 = vmatmul.mubr.bf16.gmra.mrb[0].mxu0 %v522
        %v558 = vpop.f32.mrb[0].mxu0
        %v559 = vadd.f32 0.0, %v558
        %v560 = vpop.f32.mrb[0].mxu0
        %v561 = vpop.f32.mrb[0].mxu0
        %v562 = vpop.f32.mrb[0].mxu0
        %563 = vdwg.mxu0
        %v564 = vlaneseq
        %v565 = vshrl.u32 %v564, 7
        %v566 = vsub.s32 0, %v565
        %v567 = vrot.slane %v498, %v566
        %v568 = vadd.f32 %v559, %v567
        %v569 = vlaneseq
        %v570 = vshrl.u32 %v569, 7
        %v571 = vsub.s32 1, %v570
        %v572 = vrot.slane %v498, %v571
        %574 = vrot.lane.b32.xlu0 %v572, 32
        %v575 = vpop.permute.xlu0 %574
        %v577 = vadd.f32 %v559, %v575
        %v578 = vpack.c.bf16 %v500, %v500
        %v579 = vld [vmem:[%s469] sm:$0xf]
        %v580 = vld [vmem:[%s469 + $0x4] sm:$0xf]
        %v581 = vld [vmem:[%s469 + $0x8] sm:$0xf]
        %v582 = vld [vmem:[%s469 + $0xc] sm:$0xf]
        %v583 = vlaneseq
        %v584 = vshrl.u32 %v583, 7
        %v585 = vsub.s32 2, %v584
        %v586 = vrot.slane %v498, %v585
        %v591 = vunpack.c.l.b16 %v579
        %v592 = vunpack.c.l.b16 %v580
        %v593 = vunpack.c.l.b16 %v581
        %v594 = vunpack.c.l.b16 %v582
        %v595 = vpack.c.b16 %v592, %v591
        %v596 = vpack.c.b16 %v594, %v593
        %v600 = vsel %vm520, %v578, 0
        %602 = vmatprep.subr.bf16.mxu0 0
        %603 = vmatpush1.bf16.msra.mxu0 %v595
        %604 = vmatprep.subr.bf16.mxu0 0
        %605 = vmatpush1.bf16.msra.mxu0 %v596
        %606 = vmatprep.subr.bf16.mxu0 0
        %607 = vmatpush1.bf16.msra.mxu0 0
        %608 = vmatprep.subr.bf16.mxu0 0
        %609 = vmatpush1.bf16.msra.mxu0 0
        %610 = vmatprep.subr.bf16.mxu0 0
        %611 = vmatpush1.bf16.msra.mxu0 0
        %612 = vmatprep.subr.bf16.mxu0 0
        %613 = vmatpush1.bf16.msra.mxu0 0
        %614 = vmatprep.subr.bf16.mxu0 0
        %615 = vmatpush1.bf16.msra.mxu0 0
        %616 = vmatprep.subr.bf16.mxu0 0
        %617 = vmatpush1.bf16.msra.mxu0 0
        %618 = vmatprep.subr.bf16.mxu0 0
        %619 = vmatpush1.bf16.msra.mxu0 0
        %620 = vmatprep.subr.bf16.mxu0 0
        %621 = vmatpush1.bf16.msra.mxu0 0
        %622 = vmatprep.subr.bf16.mxu0 0
        %623 = vmatpush1.bf16.msra.mxu0 0
        %624 = vmatprep.subr.bf16.mxu0 0
        %625 = vmatpush1.bf16.msra.mxu0 0
        %626 = vmatprep.subr.bf16.mxu0 0
        %627 = vmatpush1.bf16.msra.mxu0 0
        %628 = vmatprep.subr.bf16.mxu0 0
        %629 = vmatpush1.bf16.msra.mxu0 0
        %630 = vmatprep.subr.bf16.mxu0 0
        %631 = vmatpush1.bf16.msra.mxu0 0
        %632 = vmatprep.subr.bf16.mxu0 0
        %633 = vmatpush1.bf16.msra.mxu0 0
        %634 = vmatprep.mubr.bf16.mxu0 0
        %635 = vmatmul.mubr.bf16.gmra.mrb[0].mxu0 %v600
        %v636 = vpop.f32.mrb[0].mxu0
        %v637 = vadd.f32 %v586, %v636
        %v638 = vpop.f32.mrb[0].mxu0
        %v639 = vpop.f32.mrb[0].mxu0
        %v640 = vpop.f32.mrb[0].mxu0
        %641 = vdwg.mxu0
        %v642 = vld [vmem:[%s474] sm:$0xf]
        %v643 = vld [vmem:[%s474 + $0x4] sm:$0xf]
        %v644 = vld [vmem:[%s474 + $0x8] sm:$0xf]
        %v645 = vld [vmem:[%s474 + $0xc] sm:$0xf]
        %v646 = vld [vmem:[%s479] sm:$0xf]
        %v647 = vld [vmem:[%s479 + $0x4] sm:$0xf]
        %v648 = vld [vmem:[%s479 + $0x8] sm:$0xf]
        %v649 = vld [vmem:[%s479 + $0xc] sm:$0xf]
        %v650 = vld [vmem:[%s484] sm:$0xf]
        %v651 = vld [vmem:[%s484 + $0x4] sm:$0xf]
        %v652 = vld [vmem:[%s484 + $0x8] sm:$0xf]
        %v653 = vld [vmem:[%s484 + $0xc] sm:$0xf]
        %v654 = vld [vmem:[%s484 + $0x10] sm:$0xf]
        %v655 = vld [vmem:[%s484 + $0x14] sm:$0xf]
        %v656 = vld [vmem:[%s484 + $0x18] sm:$0xf]
        %v657 = vld [vmem:[%s484 + $0x1c] sm:$0xf]
        %v658 = vpack.c.bf16 %v568, %v568
        %v659 = vpack.c.bf16 %v577, %v577
        %v660 = vpack.c.bf16 %v637, %v637
        %662 = vrot.lane.b32.xlu0 %v659, 96
        %v663 = vpop.permute.xlu0 %662
        %vm664 = vcmask 64512
        %v666 = vsel %vm664, %v658, 0
        %v669 = vsel %vm664, %v663, 0
        %671 = vmatprep.subr.bf16.mxu0 0
        %672 = vmatpush1.bf16.xpose.msra.mxu0 %v669
        %673 = vmatprep.subr.bf16.mxu0 0
        %674 = vmatpush1.bf16.xpose.msra.mxu0 0
        %675 = vmatprep.subr.bf16.mxu0 0
        %676 = vmatpush1.bf16.xpose.msra.mxu0 0
        %677 = vmatprep.subr.bf16.mxu0 0
        %678 = vmatpush1.bf16.xpose.msra.mxu0 0
        %679 = vmatprep.subr.bf16.mxu0 0
        %680 = vmatpush1.bf16.xpose.msra.mxu0 0
        %681 = vmatprep.subr.bf16.mxu0 0
        %682 = vmatpush1.bf16.xpose.msra.mxu0 0
        %683 = vmatprep.subr.bf16.mxu0 0
        %684 = vmatpush1.bf16.xpose.msra.mxu0 0
        %685 = vmatprep.subr.bf16.mxu0 0
        %686 = vmatpush1.bf16.xpose.msra.mxu0 0
        %687 = vmatprep.subr.bf16.mxu0 0
        %688 = vmatpush1.bf16.xpose.msra.mxu0 0
        %689 = vmatprep.subr.bf16.mxu0 0
        %690 = vmatpush1.bf16.xpose.msra.mxu0 0
        %691 = vmatprep.subr.bf16.mxu0 0
        %692 = vmatpush1.bf16.xpose.msra.mxu0 0
        %693 = vmatprep.subr.bf16.mxu0 0
        %694 = vmatpush1.bf16.xpose.msra.mxu0 0
        %695 = vmatprep.subr.bf16.mxu0 0
        %696 = vmatpush1.bf16.xpose.msra.mxu0 0
        %697 = vmatprep.subr.bf16.mxu0 0
        %698 = vmatpush1.bf16.xpose.msra.mxu0 0
        %699 = vmatprep.subr.bf16.mxu0 0
        %700 = vmatpush1.bf16.xpose.msra.mxu0 0
        %701 = vmatprep.subr.bf16.mxu0 0
        %702 = vmatpush1.bf16.xpose.msra.mxu0 0
        %703 = vmatprep.mubr.bf16.mxu0 0
        %704 = vmatmul.mubr.bf16.gmra.mrb[0].mxu0 %v666
        %v705 = vpop.f32.mrb[0].mxu0
        %v706 = vadd.f32 0.0, %v705
        %v707 = vpop.f32.mrb[0].mxu0
        %v708 = vpop.f32.mrb[0].mxu0
        %v709 = vpop.f32.mrb[0].mxu0
        %710 = vdwg.mxu0
        %v711 = vsel %vm664, %v706, -inf
        %712 = vmax.xlane.f32.xlu0 %v711
        %v713 = vpop.xlane.xlu0 %712
        %v714 = vsub.f32 %v706, %v713
        %v715 = vmul.f32 %v714, 1.442695
        %v716 = vpow.pop %v715
        %v717 = vsel %vm664, %v716, 0.0
        %718 = vadd.xlane.f32.xlu0 %v717
        %v719 = vpop.xlane.xlu0 %718
        %v720 = vrcp.pop %v719
        %v721 = vmul.f32 %v716, %v720
        %v722 = vpack.c.bf16 %v721, %v721
        %v724 = vsel %vm664, %v722, 0
        %vm726 = vcmask 1043456
        %v728 = vsel %vm726, %v660, 0
        %730 = vmatprep.subr.bf16.mxu0 0
        %731 = vmatpush1.bf16.msra.mxu0 %v728
        %732 = vmatprep.subr.bf16.mxu0 0
        %733 = vmatpush1.bf16.msra.mxu0 0
        %734 = vmatprep.subr.bf16.mxu0 0
        %735 = vmatpush1.bf16.msra.mxu0 0
        %736 = vmatprep.subr.bf16.mxu0 0
        %737 = vmatpush1.bf16.msra.mxu0 0
        %738 = vmatprep.subr.bf16.mxu0 0
        %739 = vmatpush1.bf16.msra.mxu0 0
        %740 = vmatprep.subr.bf16.mxu0 0
        %741 = vmatpush1.bf16.msra.mxu0 0
        %742 = vmatprep.subr.bf16.mxu0 0
        %743 = vmatpush1.bf16.msra.mxu0 0
        %744 = vmatprep.subr.bf16.mxu0 0
        %745 = vmatpush1.bf16.msra.mxu0 0
        %746 = vmatprep.subr.bf16.mxu0 0
        %747 = vmatpush1.bf16.msra.mxu0 0
        %748 = vmatprep.subr.bf16.mxu0 0
        %749 = vmatpush1.bf16.msra.mxu0 0
        %750 = vmatprep.subr.bf16.mxu0 0
        %751 = vmatpush1.bf16.msra.mxu0 0
        %752 = vmatprep.subr.bf16.mxu0 0
        %753 = vmatpush1.bf16.msra.mxu0 0
        %754 = vmatprep.subr.bf16.mxu0 0
        %755 = vmatpush1.bf16.msra.mxu0 0
        %756 = vmatprep.subr.bf16.mxu0 0
        %757 = vmatpush1.bf16.msra.mxu0 0
        %758 = vmatprep.subr.bf16.mxu0 0
        %759 = vmatpush1.bf16.msra.mxu0 0
        %760 = vmatprep.subr.bf16.mxu0 0
        %761 = vmatpush1.bf16.msra.mxu0 0
        %762 = vmatprep.mubr.bf16.mxu0 0
        %763 = vmatmul.mubr.bf16.gmra.mrb[0].mxu0 %v724
        %v764 = vpop.f32.mrb[0].mxu0
        %v765 = vadd.f32 0.0, %v764
        %v766 = vpop.f32.mrb[0].mxu0
        %v767 = vpop.f32.mrb[0].mxu0
        %v768 = vpop.f32.mrb[0].mxu0
        %769 = vdwg.mxu0
        %v770 = vpack.c.bf16 %v765, %v765
        %772 = vrot.lane.b32.xlu0 %v658, 120
        %v773 = vpop.permute.xlu0 %772
        %774 = vrot.lane.b32.xlu0 %v659, 88
        %v775 = vpop.permute.xlu0 %774
        %v777 = vsel %vm664, %v773, 0
        %v780 = vsel %vm664, %v775, 0
        %782 = vmatprep.subr.bf16.mxu0 0
        %783 = vmatpush1.bf16.xpose.msra.mxu0 %v780
        %784 = vmatprep.subr.bf16.mxu0 0
        %785 = vmatpush1.bf16.xpose.msra.mxu0 0
        %786 = vmatprep.subr.bf16.mxu0 0
        %787 = vmatpush1.bf16.xpose.msra.mxu0 0
        %788 = vmatprep.subr.bf16.mxu0 0
        %789 = vmatpush1.bf16.xpose.msra.mxu0 0
        %790 = vmatprep.subr.bf16.mxu0 0
        %791 = vmatpush1.bf16.xpose.msra.mxu0 0
        %792 = vmatprep.subr.bf16.mxu0 0
        %793 = vmatpush1.bf16.xpose.msra.mxu0 0
        %794 = vmatprep.subr.bf16.mxu0 0
        %795 = vmatpush1.bf16.xpose.msra.mxu0 0
        %796 = vmatprep.subr.bf16.mxu0 0
        %797 = vmatpush1.bf16.xpose.msra.mxu0 0
        %798 = vmatprep.subr.bf16.mxu0 0
        %799 = vmatpush1.bf16.xpose.msra.mxu0 0
        %800 = vmatprep.subr.bf16.mxu0 0
        %801 = vmatpush1.bf16.xpose.msra.mxu0 0
        %802 = vmatprep.subr.bf16.mxu0 0
        %803 = vmatpush1.bf16.xpose.msra.mxu0 0
        %804 = vmatprep.subr.bf16.mxu0 0
        %805 = vmatpush1.bf16.xpose.msra.mxu0 0
        %806 = vmatprep.subr.bf16.mxu0 0
        %807 = vmatpush1.bf16.xpose.msra.mxu0 0
        %808 = vmatprep.subr.bf16.mxu0 0
        %809 = vmatpush1.bf16.xpose.msra.mxu0 0
        %810 = vmatprep.subr.bf16.mxu0 0
        %811 = vmatpush1.bf16.xpose.msra.mxu0 0
        %812 = vmatprep.subr.bf16.mxu0 0
        %813 = vmatpush1.bf16.xpose.msra.mxu0 0
        %814 = vmatprep.mubr.bf16.mxu0 0
        %815 = vmatmul.mubr.bf16.gmra.mrb[0].mxu0 %v777
        %v816 = vpop.f32.mrb[0].mxu0
        %v817 = vadd.f32 0.0, %v816
        %v818 = vpop.f32.mrb[0].mxu0
        %v819 = vpop.f32.mrb[0].mxu0
        %v820 = vpop.f32.mrb[0].mxu0
        %821 = vdwg.mxu0
        %v822 = vsel %vm664, %v817, -inf
        %823 = vmax.xlane.f32.xlu0 %v822
        %v824 = vpop.xlane.xlu0 %823
        %v825 = vsub.f32 %v817, %v824
        %v826 = vmul.f32 %v825, 1.442695
        %v827 = vpow.pop %v826
        %v828 = vsel %vm664, %v827, 0.0
        %829 = vadd.xlane.f32.xlu0 %v828
        %v830 = vpop.xlane.xlu0 %829
        %v831 = vrcp.pop %v830
        %v832 = vmul.f32 %v827, %v831
        %v833 = vpack.c.bf16 %v832, %v832
        %835 = vrot.lane.b32.xlu0 %v660, 120
        %v836 = vpop.permute.xlu0 %835
        %v838 = vsel %vm664, %v833, 0
        %v841 = vsel %vm726, %v836, 0
        %843 = vmatprep.subr.bf16.mxu0 0
        %844 = vmatpush1.bf16.msra.mxu0 %v841
        %845 = vmatprep.subr.bf16.mxu0 0
        %846 = vmatpush1.bf16.msra.mxu0 0
        %847 = vmatprep.subr.bf16.mxu0 0
        %848 = vmatpush1.bf16.msra.mxu0 0
        %849 = vmatprep.subr.bf16.mxu0 0
        %850 = vmatpush1.bf16.msra.mxu0 0
        %851 = vmatprep.subr.bf16.mxu0 0
        %852 = vmatpush1.bf16.msra.mxu0 0
        %853 = vmatprep.subr.bf16.mxu0 0
        %854 = vmatpush1.bf16.msra.mxu0 0
        %855 = vmatprep.subr.bf16.mxu0 0
        %856 = vmatpush1.bf16.msra.mxu0 0
        %857 = vmatprep.subr.bf16.mxu0 0
        %858 = vmatpush1.bf16.msra.mxu0 0
        %859 = vmatprep.subr.bf16.mxu0 0
        %860 = vmatpush1.bf16.msra.mxu0 0
        %861 = vmatprep.subr.bf16.mxu0 0
        %862 = vmatpush1.bf16.msra.mxu0 0
        %863 = vmatprep.subr.bf16.mxu0 0
        %864 = vmatpush1.bf16.msra.mxu0 0
        %865 = vmatprep.subr.bf16.mxu0 0
        %866 = vmatpush1.bf16.msra.mxu0 0
        %867 = vmatprep.subr.bf16.mxu0 0
        %868 = vmatpush1.bf16.msra.mxu0 0
        %869 = vmatprep.subr.bf16.mxu0 0
        %870 = vmatpush1.bf16.msra.mxu0 0
        %871 = vmatprep.subr.bf16.mxu0 0
        %872 = vmatpush1.bf16.msra.mxu0 0
        %873 = vmatprep.subr.bf16.mxu0 0
        %874 = vmatpush1.bf16.msra.mxu0 0
        %875 = vmatprep.mubr.bf16.mxu0 0
        %876 = vmatmul.mubr.bf16.gmra.mrb[0].mxu0 %v838
        %v877 = vpop.f32.mrb[0].mxu0
        %v878 = vadd.f32 0.0, %v877
        %v879 = vpop.f32.mrb[0].mxu0
        %v880 = vpop.f32.mrb[0].mxu0
        %v881 = vpop.f32.mrb[0].mxu0
        %882 = vdwg.mxu0
        %v883 = vpack.c.bf16 %v878, %v878
        %v885 = vsel %vm664, %v883, 0
        %v888 = vsel %vm726, %v643, 0
        %890 = vmatprep.subr.bf16.mxu0 0
        %891 = vmatpush1.bf16.msra.mxu0 %v888
        %892 = vmatprep.subr.bf16.mxu0 0
        %893 = vmatpush1.bf16.msra.mxu0 0
        %894 = vmatprep.subr.bf16.mxu0 0
        %895 = vmatpush1.bf16.msra.mxu0 0
        %896 = vmatprep.subr.bf16.mxu0 0
        %897 = vmatpush1.bf16.msra.mxu0 0
        %898 = vmatprep.subr.bf16.mxu0 0
        %899 = vmatpush1.bf16.msra.mxu0 0
        %900 = vmatprep.subr.bf16.mxu0 0
        %901 = vmatpush1.bf16.msra.mxu0 0
        %902 = vmatprep.subr.bf16.mxu0 0
        %903 = vmatpush1.bf16.msra.mxu0 0
        %904 = vmatprep.subr.bf16.mxu0 0
        %905 = vmatpush1.bf16.msra.mxu0 0
        %906 = vmatprep.subr.bf16.mxu0 0
        %907 = vmatpush1.bf16.msra.mxu0 0
        %908 = vmatprep.subr.bf16.mxu0 0
        %909 = vmatpush1.bf16.msra.mxu0 0
        %910 = vmatprep.subr.bf16.mxu0 0
        %911 = vmatpush1.bf16.msra.mxu0 0
        %912 = vmatprep.subr.bf16.mxu0 0
        %913 = vmatpush1.bf16.msra.mxu0 0
        %914 = vmatprep.subr.bf16.mxu0 0
        %915 = vmatpush1.bf16.msra.mxu0 0
        %916 = vmatprep.subr.bf16.mxu0 0
        %917 = vmatpush1.bf16.msra.mxu0 0
        %918 = vmatprep.subr.bf16.mxu0 0
        %919 = vmatpush1.bf16.msra.mxu0 0
        %920 = vmatprep.subr.bf16.mxu0 0
        %921 = vmatpush1.bf16.msra.mxu0 0
        %922 = vmatprep.mubr.bf16.mxu0 0
        %923 = vmatmul.mubr.bf16.gmra.mrb[0].mxu0 %v885
        %v924 = vpop.f32.mrb[0].mxu0
        %v925 = vadd.f32 0.0, %v924
        %v926 = vpop.f32.mrb[0].mxu0
        %v927 = vpop.f32.mrb[0].mxu0
        %v928 = vpop.f32.mrb[0].mxu0
        %929 = vdwg.mxu0
        %v931 = vsel %vm664, %v770, 0
        %v934 = vsel %vm726, %v642, 0
        %936 = vmatprep.subr.bf16.mxu0 0
        %937 = vmatpush1.bf16.msra.mxu0 %v934
        %938 = vmatprep.subr.bf16.mxu0 0
        %939 = vmatpush1.bf16.msra.mxu0 0
        %940 = vmatprep.subr.bf16.mxu0 0
        %941 = vmatpush1.bf16.msra.mxu0 0
        %942 = vmatprep.subr.bf16.mxu0 0
        %943 = vmatpush1.bf16.msra.mxu0 0
        %944 = vmatprep.subr.bf16.mxu0 0
        %945 = vmatpush1.bf16.msra.mxu0 0
        %946 = vmatprep.subr.bf16.mxu0 0
        %947 = vmatpush1.bf16.msra.mxu0 0
        %948 = vmatprep.subr.bf16.mxu0 0
        %949 = vmatpush1.bf16.msra.mxu0 0
        %950 = vmatprep.subr.bf16.mxu0 0
        %951 = vmatpush1.bf16.msra.mxu0 0
        %952 = vmatprep.subr.bf16.mxu0 0
        %953 = vmatpush1.bf16.msra.mxu0 0
        %954 = vmatprep.subr.bf16.mxu0 0
        %955 = vmatpush1.bf16.msra.mxu0 0
        %956 = vmatprep.subr.bf16.mxu0 0
        %957 = vmatpush1.bf16.msra.mxu0 0
        %958 = vmatprep.subr.bf16.mxu0 0
        %959 = vmatpush1.bf16.msra.mxu0 0
        %960 = vmatprep.subr.bf16.mxu0 0
        %961 = vmatpush1.bf16.msra.mxu0 0
        %962 = vmatprep.subr.bf16.mxu0 0
        %963 = vmatpush1.bf16.msra.mxu0 0
        %964 = vmatprep.subr.bf16.mxu0 0
        %965 = vmatpush1.bf16.msra.mxu0 0
        %966 = vmatprep.subr.bf16.mxu0 0
        %967 = vmatpush1.bf16.msra.mxu0 0
        %968 = vmatprep.mubr.bf16.mxu0 0
        %969 = vmatmul.mubr.bf16.gmra.mrb[0].mxu0 %v931
        %v970 = vpop.f32.mrb[0].mxu0
        %v971 = vadd.f32 %v925, %v970
        %v972 = vpop.f32.mrb[0].mxu0
        %v973 = vpop.f32.mrb[0].mxu0
        %v974 = vpop.f32.mrb[0].mxu0
        %975 = vdwg.mxu0
        %976 = vrot.lane.b32.xlu0 %v658, 112
        %v977 = vpop.permute.xlu0 %976
        %978 = vrot.lane.b32.xlu0 %v659, 80
        %v979 = vpop.permute.xlu0 %978
        %v981 = vsel %vm664, %v977, 0
        %v984 = vsel %vm664, %v979, 0
        %986 = vmatprep.subr.bf16.mxu0 0
        %987 = vmatpush1.bf16.xpose.msra.mxu0 %v984
        %988 = vmatprep.subr.bf16.mxu0 0
        %989 = vmatpush1.bf16.xpose.msra.mxu0 0
        %990 = vmatprep.subr.bf16.mxu0 0
        %991 = vmatpush1.bf16.xpose.msra.mxu0 0
        %992 = vmatprep.subr.bf16.mxu0 0
        %993 = vmatpush1.bf16.xpose.msra.mxu0 0
        %994 = vmatprep.subr.bf16.mxu0 0
        %995 = vmatpush1.bf16.xpose.msra.mxu0 0
        %996 = vmatprep.subr.bf16.mxu0 0
        %997 = vmatpush1.bf16.xpose.msra.mxu0 0
        %998 = vmatprep.subr.bf16.mxu0 0
        %999 = vmatpush1.bf16.xpose.msra.mxu0 0
        %1000 = vmatprep.subr.bf16.mxu0 0
        %1001 = vmatpush1.bf16.xpose.msra.mxu0 0
        %1002 = vmatprep.subr.bf16.mxu0 0
        %1003 = vmatpush1.bf16.xpose.msra.mxu0 0
        %1004 = vmatprep.subr.bf16.mxu0 0
        %1005 = vmatpush1.bf16.xpose.msra.mxu0 0
        %1006 = vmatprep.subr.bf16.mxu0 0
        %1007 = vmatpush1.bf16.xpose.msra.mxu0 0
        %1008 = vmatprep.subr.bf16.mxu0 0
        %1009 = vmatpush1.bf16.xpose.msra.mxu0 0
        %1010 = vmatprep.subr.bf16.mxu0 0
        %1011 = vmatpush1.bf16.xpose.msra.mxu0 0
        %1012 = vmatprep.subr.bf16.mxu0 0
        %1013 = vmatpush1.bf16.xpose.msra.mxu0 0
        %1014 = vmatprep.subr.bf16.mxu0 0
        %1015 = vmatpush1.bf16.xpose.msra.mxu0 0
        %1016 = vmatprep.subr.bf16.mxu0 0
        %1017 = vmatpush1.bf16.xpose.msra.mxu0 0
        %1018 = vmatprep.mubr.bf16.mxu0 0
        %1019 = vmatmul.mubr.bf16.gmra.mrb[0].mxu0 %v981
        %v1020 = vpop.f32.mrb[0].mxu0
        %v1021 = vadd.f32 0.0, %v1020
        %v1022 = vpop.f32.mrb[0].mxu0
        %v1023 = vpop.f32.mrb[0].mxu0
        %v1024 = vpop.f32.mrb[0].mxu0
        %1025 = vdwg.mxu0
        %v1026 = vsel %vm664, %v1021, -inf
        %1027 = vmax.xlane.f32.xlu0 %v1026
        %v1028 = vpop.xlane.xlu0 %1027
        %v1029 = vsub.f32 %v1021, %v1028
        %v1030 = vmul.f32 %v1029, 1.442695
        %v1031 = vpow.pop %v1030
        %v1032 = vsel %vm664, %v1031, 0.0
        %1033 = vadd.xlane.f32.xlu0 %v1032
        %v1034 = vpop.xlane.xlu0 %1033
        %v1035 = vrcp.pop %v1034
        %v1036 = vmul.f32 %v1031, %v1035
        %v1037 = vpack.c.bf16 %v1036, %v1036
        %1038 = vrot.lane.b32.xlu0 %v660, 112
        %v1039 = vpop.permute.xlu0 %1038
        %v1041 = vsel %vm664, %v1037, 0
        %v1044 = vsel %vm726, %v1039, 0
        %1046 = vmatprep.subr.bf16.mxu0 0
        %1047 = vmatpush1.bf16.msra.mxu0 %v1044
        %1048 = vmatprep.subr.bf16.mxu0 0
        %1049 = vmatpush1.bf16.msra.mxu0 0
        %1050 = vmatprep.subr.bf16.mxu0 0
        %1051 = vmatpush1.bf16.msra.mxu0 0
        %1052 = vmatprep.subr.bf16.mxu0 0
        %1053 = vmatpush1.bf16.msra.mxu0 0
        %1054 = vmatprep.subr.bf16.mxu0 0
        %1055 = vmatpush1.bf16.msra.mxu0 0
        %1056 = vmatprep.subr.bf16.mxu0 0
        %1057 = vmatpush1.bf16.msra.mxu0 0
        %1058 = vmatprep.subr.bf16.mxu0 0
        %1059 = vmatpush1.bf16.msra.mxu0 0
        %1060 = vmatprep.subr.bf16.mxu0 0
        %1061 = vmatpush1.bf16.msra.mxu0 0
        %1062 = vmatprep.subr.bf16.mxu0 0
        %1063 = vmatpush1.bf16.msra.mxu0 0
        %1064 = vmatprep.subr.bf16.mxu0 0
        %1065 = vmatpush1.bf16.msra.mxu0 0
        %1066 = vmatprep.subr.bf16.mxu0 0
        %1067 = vmatpush1.bf16.msra.mxu0 0
        %1068 = vmatprep.subr.bf16.mxu0 0
        %1069 = vmatpush1.bf16.msra.mxu0 0
        %1070 = vmatprep.subr.bf16.mxu0 0
        %1071 = vmatpush1.bf16.msra.mxu0 0
        %1072 = vmatprep.subr.bf16.mxu0 0
        %1073 = vmatpush1.bf16.msra.mxu0 0
        %1074 = vmatprep.subr.bf16.mxu0 0
        %1075 = vmatpush1.bf16.msra.mxu0 0
        %1076 = vmatprep.subr.bf16.mxu0 0
        %1077 = vmatpush1.bf16.msra.mxu0 0
        %1078 = vmatprep.mubr.bf16.mxu0 0
        %1079 = vmatmul.mubr.bf16.gmra.mrb[0].mxu0 %v1041
        %v1080 = vpop.f32.mrb[0].mxu0
        %v1081 = vadd.f32 0.0, %v1080
        %v1082 = vpop.f32.mrb[0].mxu0
        %v1083 = vpop.f32.mrb[0].mxu0
        %v1084 = vpop.f32.mrb[0].mxu0
        %1085 = vdwg.mxu0
        %v1086 = vpack.c.bf16 %v1081, %v1081
        %v1088 = vsel %vm664, %v1086, 0
        %v1091 = vsel %vm726, %v644, 0
        %1093 = vmatprep.subr.bf16.mxu0 0
        %1094 = vmatpush1.bf16.msra.mxu0 %v1091
        %1095 = vmatprep.subr.bf16.mxu0 0
        %1096 = vmatpush1.bf16.msra.mxu0 0
        %1097 = vmatprep.subr.bf16.mxu0 0
        %1098 = vmatpush1.bf16.msra.mxu0 0
        %1099 = vmatprep.subr.bf16.mxu0 0
        %1100 = vmatpush1.bf16.msra.mxu0 0
        %1101 = vmatprep.subr.bf16.mxu0 0
        %1102 = vmatpush1.bf16.msra.mxu0 0
        %1103 = vmatprep.subr.bf16.mxu0 0
        %1104 = vmatpush1.bf16.msra.mxu0 0
        %1105 = vmatprep.subr.bf16.mxu0 0
        %1106 = vmatpush1.bf16.msra.mxu0 0
        %1107 = vmatprep.subr.bf16.mxu0 0
        %1108 = vmatpush1.bf16.msra.mxu0 0
        %1109 = vmatprep.subr.bf16.mxu0 0
        %1110 = vmatpush1.bf16.msra.mxu0 0
        %1111 = vmatprep.subr.bf16.mxu0 0
        %1112 = vmatpush1.bf16.msra.mxu0 0
        %1113 = vmatprep.subr.bf16.mxu0 0
        %1114 = vmatpush1.bf16.msra.mxu0 0
        %1115 = vmatprep.subr.bf16.mxu0 0
        %1116 = vmatpush1.bf16.msra.mxu0 0
        %1117 = vmatprep.subr.bf16.mxu0 0
        %1118 = vmatpush1.bf16.msra.mxu0 0
        %1119 = vmatprep.subr.bf16.mxu0 0
        %1120 = vmatpush1.bf16.msra.mxu0 0
        %1121 = vmatprep.subr.bf16.mxu0 0
        %1122 = vmatpush1.bf16.msra.mxu0 0
        %1123 = vmatprep.subr.bf16.mxu0 0
        %1124 = vmatpush1.bf16.msra.mxu0 0
        %1125 = vmatprep.mubr.bf16.mxu0 0
        %1126 = vmatmul.mubr.bf16.gmra.mrb[0].mxu0 %v1088
        %v1127 = vpop.f32.mrb[0].mxu0
        %v1128 = vadd.f32 0.0, %v1127
        %v1129 = vpop.f32.mrb[0].mxu0
        %v1130 = vpop.f32.mrb[0].mxu0
        %v1131 = vpop.f32.mrb[0].mxu0
        %1132 = vdwg.mxu0
        %v1133 = vadd.f32 %v971, %v1128
        %1134 = vrot.lane.b32.xlu0 %v658, 104
        %v1135 = vpop.permute.xlu0 %1134
        %1136 = vrot.lane.b32.xlu0 %v659, 72
        %v1137 = vpop.permute.xlu0 %1136
        %v1139 = vsel %vm664, %v1135, 0
        %v1142 = vsel %vm664, %v1137, 0
        %1144 = vmatprep.subr.bf16.mxu0 0
        %1145 = vmatpush1.bf16.xpose.msra.mxu0 %v1142
        %1146 = vmatprep.subr.bf16.mxu0 0
        %1147 = vmatpush1.bf16.xpose.msra.mxu0 0
        %1148 = vmatprep.subr.bf16.mxu0 0
        %1149 = vmatpush1.bf16.xpose.msra.mxu0 0
        %1150 = vmatprep.subr.bf16.mxu0 0
        %1151 = vmatpush1.bf16.xpose.msra.mxu0 0
        %1152 = vmatprep.subr.bf16.mxu0 0
        %1153 = vmatpush1.bf16.xpose.msra.mxu0 0
        %1154 = vmatprep.subr.bf16.mxu0 0
        %1155 = vmatpush1.bf16.xpose.msra.mxu0 0
        %1156 = vmatprep.subr.bf16.mxu0 0
        %1157 = vmatpush1.bf16.xpose.msra.mxu0 0
        %1158 = vmatprep.subr.bf16.mxu0 0
        %1159 = vmatpush1.bf16.xpose.msra.mxu0 0
        %1160 = vmatprep.subr.bf16.mxu0 0
        %1161 = vmatpush1.bf16.xpose.msra.mxu0 0
        %1162 = vmatprep.subr.bf16.mxu0 0
        %1163 = vmatpush1.bf16.xpose.msra.mxu0 0
        %1164 = vmatprep.subr.bf16.mxu0 0
        %1165 = vmatpush1.bf16.xpose.msra.mxu0 0
        %1166 = vmatprep.subr.bf16.mxu0 0
        %1167 = vmatpush1.bf16.xpose.msra.mxu0 0
        %1168 = vmatprep.subr.bf16.mxu0 0
        %1169 = vmatpush1.bf16.xpose.msra.mxu0 0
        %1170 = vmatprep.subr.bf16.mxu0 0
        %1171 = vmatpush1.bf16.xpose.msra.mxu0 0
        %1172 = vmatprep.subr.bf16.mxu0 0
        %1173 = vmatpush1.bf16.xpose.msra.mxu0 0
        %1174 = vmatprep.subr.bf16.mxu0 0
        %1175 = vmatpush1.bf16.xpose.msra.mxu0 0
        %1176 = vmatprep.mubr.bf16.mxu0 0
        %1177 = vmatmul.mubr.bf16.gmra.mrb[0].mxu0 %v1139
        %v1178 = vpop.f32.mrb[0].mxu0
        %v1179 = vadd.f32 0.0, %v1178
        %v1180 = vpop.f32.mrb[0].mxu0
        %v1181 = vpop.f32.mrb[0].mxu0
        %v1182 = vpop.f32.mrb[0].mxu0
        %1183 = vdwg.mxu0
        %v1184 = vsel %vm664, %v1179, -inf
        %1185 = vmax.xlane.f32.xlu0 %v1184
        %v1186 = vpop.xlane.xlu0 %1185
        %v1187 = vsub.f32 %v1179, %v1186
        %v1188 = vmul.f32 %v1187, 1.442695
        %v1189 = vpow.pop %v1188
        %v1190 = vsel %vm664, %v1189, 0.0
        %1191 = vadd.xlane.f32.xlu0 %v1190
        %v1192 = vpop.xlane.xlu0 %1191
        %v1193 = vrcp.pop %v1192
        %v1194 = vmul.f32 %v1189, %v1193
        %v1195 = vpack.c.bf16 %v1194, %v1194
        %1196 = vrot.lane.b32.xlu0 %v660, 104
        %v1197 = vpop.permute.xlu0 %1196
        %v1199 = vsel %vm664, %v1195, 0
        %v1202 = vsel %vm726, %v1197, 0
        %1204 = vmatprep.subr.bf16.mxu0 0
        %1205 = vmatpush1.bf16.msra.mxu0 %v1202
        %1206 = vmatprep.subr.bf16.mxu0 0
        %1207 = vmatpush1.bf16.msra.mxu0 0
        %1208 = vmatprep.subr.bf16.mxu0 0
        %1209 = vmatpush1.bf16.msra.mxu0 0
        %1210 = vmatprep.subr.bf16.mxu0 0
        %1211 = vmatpush1.bf16.msra.mxu0 0
        %1212 = vmatprep.subr.bf16.mxu0 0
        %1213 = vmatpush1.bf16.msra.mxu0 0
        %1214 = vmatprep.subr.bf16.mxu0 0
        %1215 = vmatpush1.bf16.msra.mxu0 0
        %1216 = vmatprep.subr.bf16.mxu0 0
        %1217 = vmatpush1.bf16.msra.mxu0 0
        %1218 = vmatprep.subr.bf16.mxu0 0
        %1219 = vmatpush1.bf16.msra.mxu0 0
        %1220 = vmatprep.subr.bf16.mxu0 0
        %1221 = vmatpush1.bf16.msra.mxu0 0
        %1222 = vmatprep.subr.bf16.mxu0 0
        %1223 = vmatpush1.bf16.msra.mxu0 0
        %1224 = vmatprep.subr.bf16.mxu0 0
        %1225 = vmatpush1.bf16.msra.mxu0 0
        %1226 = vmatprep.subr.bf16.mxu0 0
        %1227 = vmatpush1.bf16.msra.mxu0 0
        %1228 = vmatprep.subr.bf16.mxu0 0
        %1229 = vmatpush1.bf16.msra.mxu0 0
        %1230 = vmatprep.subr.bf16.mxu0 0
        %1231 = vmatpush1.bf16.msra.mxu0 0
        %1232 = vmatprep.subr.bf16.mxu0 0
        %1233 = vmatpush1.bf16.msra.mxu0 0
        %1234 = vmatprep.subr.bf16.mxu0 0
        %1235 = vmatpush1.bf16.msra.mxu0 0
        %1236 = vmatprep.mubr.bf16.mxu0 0
        %1237 = vmatmul.mubr.bf16.gmra.mrb[0].mxu0 %v1199
        %v1238 = vpop.f32.mrb[0].mxu0
        %v1239 = vadd.f32 0.0, %v1238
        %v1240 = vpop.f32.mrb[0].mxu0
        %v1241 = vpop.f32.mrb[0].mxu0
        %v1242 = vpop.f32.mrb[0].mxu0
        %1243 = vdwg.mxu0
        %v1244 = vpack.c.bf16 %v1239, %v1239
        %v1246 = vsel %vm664, %v1244, 0
        %v1249 = vsel %vm726, %v645, 0
        %1251 = vmatprep.subr.bf16.mxu0 0
        %1252 = vmatpush1.bf16.msra.mxu0 %v1249
        %1253 = vmatprep.subr.bf16.mxu0 0
        %1254 = vmatpush1.bf16.msra.mxu0 0
        %1255 = vmatprep.subr.bf16.mxu0 0
        %1256 = vmatpush1.bf16.msra.mxu0 0
        %1257 = vmatprep.subr.bf16.mxu0 0
        %1258 = vmatpush1.bf16.msra.mxu0 0
        %1259 = vmatprep.subr.bf16.mxu0 0
        %1260 = vmatpush1.bf16.msra.mxu0 0
        %1261 = vmatprep.subr.bf16.mxu0 0
        %1262 = vmatpush1.bf16.msra.mxu0 0
        %1263 = vmatprep.subr.bf16.mxu0 0
        %1264 = vmatpush1.bf16.msra.mxu0 0
        %1265 = vmatprep.subr.bf16.mxu0 0
        %1266 = vmatpush1.bf16.msra.mxu0 0
        %1267 = vmatprep.subr.bf16.mxu0 0
        %1268 = vmatpush1.bf16.msra.mxu0 0
        %1269 = vmatprep.subr.bf16.mxu0 0
        %1270 = vmatpush1.bf16.msra.mxu0 0
        %1271 = vmatprep.subr.bf16.mxu0 0
        %1272 = vmatpush1.bf16.msra.mxu0 0
        %1273 = vmatprep.subr.bf16.mxu0 0
        %1274 = vmatpush1.bf16.msra.mxu0 0
        %1275 = vmatprep.subr.bf16.mxu0 0
        %1276 = vmatpush1.bf16.msra.mxu0 0
        %1277 = vmatprep.subr.bf16.mxu0 0
        %1278 = vmatpush1.bf16.msra.mxu0 0
        %1279 = vmatprep.subr.bf16.mxu0 0
        %1280 = vmatpush1.bf16.msra.mxu0 0
        %1281 = vmatprep.subr.bf16.mxu0 0
        %1282 = vmatpush1.bf16.msra.mxu0 0
        %1283 = vmatprep.mubr.bf16.mxu0 0
        %1284 = vmatmul.mubr.bf16.gmra.mrb[0].mxu0 %v1246
        %v1285 = vpop.f32.mrb[0].mxu0
        %v1286 = vadd.f32 0.0, %v1285
        %v1287 = vpop.f32.mrb[0].mxu0
        %v1288 = vpop.f32.mrb[0].mxu0
        %v1289 = vpop.f32.mrb[0].mxu0
        %1290 = vdwg.mxu0
        %v1291 = vadd.f32 %v1133, %v1286
        %v1292 = vadd.f32 %v500, %v1291
        %v1293 = vlaneseq
        %v1294 = vshrl.u32 %v1293, 7
        %v1295 = vsub.s32 3, %v1294
        %v1296 = vrot.slane %v498, %v1295
        %v1297 = vadd.f32 %v1292, %v1296
        %v1298 = vsel %vm520, %v1297, 0.0
        %1299 = vadd.xlane.f32.xlu0 %v1298
        %v1300 = vpop.xlane.xlu0 %1299
        %v1301 = vrcp.pop 32.0
        %v1302 = vmul.f32 %v1300, %v1301
        %v1303 = vsub.f32 %v1297, %v1302
        %v1304 = vmul.f32 %v1303, %v1303
        %v1305 = vsel %vm520, %v1304, 0.0
        %1306 = vadd.xlane.f32.xlu0 %v1305
        %v1307 = vpop.xlane.xlu0 %1306
        %v1308 = vmul.f32 %v1307, %v1301
        %v1309 = vadd.f32 %v1308, 1e-05
        %v1310 = vrsqrt.pop %v1309
        %v1311 = vmul.f32 %v1303, %v1310
        %v1312 = vlaneseq
        %v1313 = vshrl.u32 %v1312, 7
        %v1314 = vsub.s32 6, %v1313
        %v1315 = vrot.slane %v498, %v1314
        %v1316 = vmul.f32 %v1311, %v1315
        %v1317 = vlaneseq
        %v1318 = vshrl.u32 %v1317, 7
        %v1319 = vsub.s32 7, %v1318
        %v1320 = vrot.slane %v498, %v1319
        %v1321 = vadd.f32 %v1316, %v1320
        %v1322 = vpack.c.bf16 %v1321, %v1321
        %v1323 = vlaneseq
        %v1324 = vshrl.u32 %v1323, 7
        %v1325 = vsub.s32 4, %v1324
        %v1326 = vrot.slane %v498, %v1325
        %v1331 = vunpack.c.l.b16 %v646
        %v1332 = vunpack.c.l.b16 %v647
        %v1333 = vunpack.c.l.b16 %v648
        %v1334 = vunpack.c.l.b16 %v649
        %v1335 = vpack.c.b16 %v1332, %v1331
        %v1336 = vpack.c.b16 %v1334, %v1333
        %v1340 = vsel %vm520, %v1322, 0
        %1342 = vmatprep.subr.bf16.mxu0 0
        %1343 = vmatpush1.bf16.msra.mxu0 %v1335
        %1344 = vmatprep.subr.bf16.mxu0 0
        %1345 = vmatpush1.bf16.msra.mxu0 %v1336
        %1346 = vmatprep.subr.bf16.mxu0 0
        %1347 = vmatpush1.bf16.msra.mxu0 0
        %1348 = vmatprep.subr.bf16.mxu0 0
        %1349 = vmatpush1.bf16.msra.mxu0 0
        %1350 = vmatprep.subr.bf16.mxu0 0
        %1351 = vmatpush1.bf16.msra.mxu0 0
        %1352 = vmatprep.subr.bf16.mxu0 0
        %1353 = vmatpush1.bf16.msra.mxu0 0
        %1354 = vmatprep.subr.bf16.mxu0 0
        %1355 = vmatpush1.bf16.msra.mxu0 0
        %1356 = vmatprep.subr.bf16.mxu0 0
        %1357 = vmatpush1.bf16.msra.mxu0 0
        %1358 = vmatprep.subr.bf16.mxu0 0
        %1359 = vmatpush1.bf16.msra.mxu0 0
        %1360 = vmatprep.subr.bf16.mxu0 0
        %1361 = vmatpush1.bf16.msra.mxu0 0
        %1362 = vmatprep.subr.bf16.mxu0 0
        %1363 = vmatpush1.bf16.msra.mxu0 0
        %1364 = vmatprep.subr.bf16.mxu0 0
        %1365 = vmatpush1.bf16.msra.mxu0 0
        %1366 = vmatprep.subr.bf16.mxu0 0
        %1367 = vmatpush1.bf16.msra.mxu0 0
        %1368 = vmatprep.subr.bf16.mxu0 0
        %1369 = vmatpush1.bf16.msra.mxu0 0
        %1370 = vmatprep.subr.bf16.mxu0 0
        %1371 = vmatpush1.bf16.msra.mxu0 0
        %1372 = vmatprep.subr.bf16.mxu0 0
        %1373 = vmatpush1.bf16.msra.mxu0 0
        %1374 = vmatprep.mubr.bf16.mxu0 0
        %1375 = vmatmul.mubr.bf16.gmra.mrb[0].mxu0 %v1340
        %v1376 = vpop.f32.mrb[0].mxu0
        %v1377 = vadd.f32 %v1326, %v1376
        %v1378 = vpop.f32.mrb[0].mxu0
        %v1379 = vpop.f32.mrb[0].mxu0
        %v1380 = vpop.f32.mrb[0].mxu0
        %1381 = vdwg.mxu0
        %v1382 = vmax.f32 %v1377, 0.0
        %v1383 = vpack.c.bf16 %v1382, %v1382
        %v1392 = vunpack.c.l.b16 %v650
        %v1393 = vunpack.c.l.b16 %v651
        %v1394 = vunpack.c.l.b16 %v652
        %v1395 = vunpack.c.l.b16 %v653
        %v1396 = vunpack.c.l.b16 %v654
        %v1397 = vunpack.c.l.b16 %v655
        %v1398 = vunpack.c.l.b16 %v656
        %v1399 = vunpack.c.l.b16 %v657
        %v1400 = vpack.c.b16 %v1393, %v1392
        %v1401 = vpack.c.b16 %v1395, %v1394
        %v1402 = vpack.c.b16 %v1397, %v1396
        %v1403 = vpack.c.b16 %v1399, %v1398
        %vm1408 = vcmask 523264
        %v1410 = vsel %vm1408, %v1383, 0
        %1412 = vmatprep.subr.bf16.mxu0 0
        %1413 = vmatpush1.bf16.msra.mxu0 %v1400
        %1414 = vmatprep.subr.bf16.mxu0 0
        %1415 = vmatpush1.bf16.msra.mxu0 %v1401
        %1416 = vmatprep.subr.bf16.mxu0 0
        %1417 = vmatpush1.bf16.msra.mxu0 %v1402
        %1418 = vmatprep.subr.bf16.mxu0 0
        %1419 = vmatpush1.bf16.msra.mxu0 %v1403
        %1420 = vmatprep.subr.bf16.mxu0 0
        %1421 = vmatpush1.bf16.msra.mxu0 0
        %1422 = vmatprep.subr.bf16.mxu0 0
        %1423 = vmatpush1.bf16.msra.mxu0 0
        %1424 = vmatprep.subr.bf16.mxu0 0
        %1425 = vmatpush1.bf16.msra.mxu0 0
        %1426 = vmatprep.subr.bf16.mxu0 0
        %1427 = vmatpush1.bf16.msra.mxu0 0
        %1428 = vmatprep.subr.bf16.mxu0 0
        %1429 = vmatpush1.bf16.msra.mxu0 0
        %1430 = vmatprep.subr.bf16.mxu0 0
        %1431 = vmatpush1.bf16.msra.mxu0 0
        %1432 = vmatprep.subr.bf16.mxu0 0
        %1433 = vmatpush1.bf16.msra.mxu0 0
        %1434 = vmatprep.subr.bf16.mxu0 0
        %1435 = vmatpush1.bf16.msra.mxu0 0
        %1436 = vmatprep.subr.bf16.mxu0 0
        %1437 = vmatpush1.bf16.msra.mxu0 0
        %1438 = vmatprep.subr.bf16.mxu0 0
        %1439 = vmatpush1.bf16.msra.mxu0 0
        %1440 = vmatprep.subr.bf16.mxu0 0
        %1441 = vmatpush1.bf16.msra.mxu0 0
        %1442 = vmatprep.subr.bf16.mxu0 0
        %1443 = vmatpush1.bf16.msra.mxu0 0
        %1444 = vmatprep.mubr.bf16.mxu0 0
        %1445 = vmatmul.mubr.bf16.gmra.mrb[0].mxu0 %v1410
        %v1446 = vpop.f32.mrb[0].mxu0
        %v1447 = vadd.f32 0.0, %v1446
        %v1448 = vpop.f32.mrb[0].mxu0
        %v1449 = vpop.f32.mrb[0].mxu0
        %v1450 = vpop.f32.mrb[0].mxu0
        %1451 = vdwg.mxu0
        %v1452 = vadd.f32 %v1321, %v1447
        %v1453 = vlaneseq
        %v1454 = vshrl.u32 %v1453, 7
        %v1455 = vsub.s32 5, %v1454
        %v1456 = vrot.slane %v498, %v1455
        %v1457 = vadd.f32 %v1452, %v1456
        %v1458 = vsel %vm520, %v1457, 0.0
        %1459 = vadd.xlane.f32.xlu0 %v1458
        %v1460 = vpop.xlane.xlu0 %1459
        %v1461 = vmul.f32 %v1460, %v1301
        %v1462 = vsub.f32 %v1457, %v1461
        %v1463 = vmul.f32 %v1462, %v1462
        %v1464 = vsel %vm520, %v1463, 0.0
        %1465 = vadd.xlane.f32.xlu0 %v1464
        %v1466 = vpop.xlane.xlu0 %1465
        %v1467 = vmul.f32 %v1466, %v1301
        %v1468 = vadd.f32 %v1467, 1e-05
        %v1469 = vrsqrt.pop %v1468
        %v1470 = vmul.f32 %v1462, %v1469
        %v1471 = vlaneseq
        %v1472 = vshrl.u32 %v1471, 7
        %v1473 = vsub.s32 0, %v1472
        %v1474 = vrot.slane %v499, %v1473
        %v1475 = vmul.f32 %v1470, %v1474
        %v1476 = vlaneseq
        %v1477 = vshrl.u32 %v1476, 7
        %v1478 = vsub.s32 1, %v1477
        %v1479 = vrot.slane %v499, %v1478
        %v1480 = vadd.f32 %v1475, %v1479
        %1481 = vst.msk [vmem:[%s459] sm:$0xff] %vm520, %v1480
        %s1482 = sand.u32 %s256, 1
        %s1483 = scalar_lea.sflag [#allocation4], %s1482
        %s1484 = sand.u32 %s256, 1
        %s1485 = smul.addr %s1484, 8
        %s1486 = scalar_lea.vmem [#allocation7], %s1485
        // Predicated region
        $region65: #{tpu_custom_call.1} parent=51 // pred_check
          %p1487 = pneg %p266
        $region66: #{tpu_custom_call.1} parent=51 // pred_check_branch
          %1489 = sbr.rel (%p1487) target = $region68
        $region67: #{tpu_custom_call.1} parent=51 // pred_region
          %s1491 = ssub.s32 128, 128
          %1492 = vsyncadd %s1483, %s1491
          %s1493 = smul.addr %s32, 128
          %s1494 = scalar_lea.hbm %s8, %s1493
          %s1496 = sshll.u32 %s1486, 4
          %s1497 = int_to_ptr.vmem [resolvable:$true] %s1496
          %1499 = dma.vmem_to_hbm [thread:$0]  %s1497, 128, %s1494, %s1483
        $region68: #{tpu_custom_call.1} parent=51 // pred_fallthru
          _
      $region52: #{tpu_custom_call.1} parent=5 // pred_fallthru
        _
      %p1500 = scmp.le.s32.totalorder 2, %s23
      // Predicated region
      $region69: #{tpu_custom_call.1} parent=5 // pred_check
        %p1501 = pneg %p1500
      $region70: #{tpu_custom_call.1} parent=5 // pred_check_branch
        %1503 = sbr.rel (%p1501) target = $region72
      $region71: #{tpu_custom_call.1} parent=5 // pred_region
        %s1504 = ssub.s32 %s23, 2
        // Predicated region
        $region73: #{tpu_custom_call.1} parent=71 // pred_check
          %p1505 = pneg %p272
        $region74: #{tpu_custom_call.1} parent=71 // pred_check_branch
          %1507 = sbr.rel (%p1505) target = $region76
        $region75: #{tpu_custom_call.1} parent=71 // pred_region
          %s1508 = sand.u32 %s257, 1
          %s1509 = scalar_lea.sflag [#allocation4], %s1508
          %s1510 = sand.u32 %s257, 1
          %s1511 = smul.addr %s1510, 8
          %s1512 = scalar_lea.vmem [#allocation7], %s1511
          %1513 = dma.done %s1509, 128
        $region76: #{tpu_custom_call.1} parent=71 // pred_fallthru
          _
      $region72: #{tpu_custom_call.1} parent=5 // pred_fallthru
        _
    $region6: #{tpu_custom_call.1} parent=1 // loop_footer
      %s27 = sadd.s32 1, %s23
    $region7: #{tpu_custom_call.1} parent=1 // loop_footer_branch
      %22 = sbr.rel target = $region3
    $region8: #{tpu_custom_call.1} parent=1 // loop_exit
      _
    %1514 = vsyncpa [#allocation3], 1
    %s1515 = scalar_lea.sflag [#allocation3], 1
    %1516 = vsyncpa %s1515, 1
    %1517 = vsyncpa [#allocation6], 1
    %s1518 = scalar_lea.sflag [#allocation6], 1
    %1519 = vsyncpa %s1518, 1
    %1520 = vsyncpa [#allocation4], 1
    %s1521 = scalar_lea.sflag [#allocation4], 1
    %1522 = vsyncpa %s1521, 1

</llo_original>
